<compile_context>
chip_gen: v7x
topology: tpu7x:2x2x1
jax: 0.10.0
libtpu: 0.0.40
codegen_flags: <defaults>
</compile_context>

<pallas_src>
import functools

import jax
import jax.numpy as jnp
import numpy as np
from jax.experimental import pallas as pl
from jax.experimental.pallas import tpu as pltpu


# ----------------------------------------------------------------------------
# Pallas kernel
# ----------------------------------------------------------------------------
def _mha_kernel(mask_ref, hq_ref, hfT_ref,
                wq_ref, bq_ref, wk_ref, bk_ref, wv_ref, bv_ref,
                wo_ref, bo_ref, w1_ref, b1_ref, w2_ref, b2_ref,
                lnw_ref, lnb_ref,
                out_ref,
                kT_scr, vT_scr,
                *, d_head, nb_heads, d_model_real, ln_eps):
    f32 = jnp.float32
    bf16 = jnp.bfloat16
    H, dh = nb_heads, d_head

    # ---- K/V projection: computed ONCE per batch element (qi == 0), cached in
    #      persistent VMEM scratch.  qi is the innermost ("arbitrary") grid axis.
    @pl.when(pl.program_id(1) == 0)
    def _project_kv():
        hfT = hfT_ref[0]                                   # [Dp, L] bf16 (pre-transposed in wrapper)
        kT = jnp.dot(wk_ref[...], hfT, preferred_element_type=f32) + bk_ref[...]
        vT = jnp.dot(wv_ref[...], hfT, preferred_element_type=f32) + bv_ref[...]
        kT_scr[...] = kT.astype(bf16)                      # [hd, L]
        vT_scr[...] = vT.astype(bf16)                      # [hd, L]

    hq = hq_ref[0]                                         # [TQ, Dp] f32 (query rows / residual path)
    tq = hq.shape[0]
    lk = kT_scr.shape[1]

    hq_b = hq.astype(bf16)                                 # cast BEFORE the transpose (half XLU bytes)
    hqT = jnp.transpose(hq_b)                              # [Dp, TQ] bf16

    # Q projection (1/sqrt(d_head) already folded into wq/bq in the wrapper).
    qT = jnp.dot(wq_ref[...], hqT, preferred_element_type=f32) + bq_ref[...]   # [hd, TQ]

    # Head-major split along the sublane axis (free when d_head % 8 == 0).
    # No per-head transpose: scores use the transposed-LHS contraction directly.
    q3T = qT.astype(bf16).reshape(H, dh, tq)               # [H, dh, TQ]
    k3T = kT_scr[...].reshape(H, dh, lk)                   # [H, dh, L]
    v3T = vT_scr[...].reshape(H, dh, lk)                   # [H, dh, L]

    # scores: [H, dh, TQ] x [H, dh, L] -> [H, TQ, L]  (contract dh, batch h)
    s = jnp.einsum('hdq,hdk->hqk', q3T, k3T, preferred_element_type=f32)

    pad = (mask_ref[0] != 0)[None, :, :]                   # [1, 1, L], True = padded key
    s = jnp.where(pad, jnp.float32(-1000000000.0), s)

    # softmax over keys (f32), reciprocal on the EUP.
    s = s - jnp.max(s, axis=-1, keepdims=True)
    p = jnp.exp(s)
    p = p * pl.reciprocal(jnp.sum(p, axis=-1, keepdims=True), approx=True)

    # P @ V (contract keys), kept head-transposed: [H, dh, TQ]
    attT3 = jnp.einsum('hdk,hqk->hdq', v3T, p.astype(bf16), preferred_element_type=f32)
    attT = attT3.astype(bf16).reshape(H * dh, tq)          # [hd, TQ] (sublane merge, free)

    # Output projection: explicit transposed-LHS MXU contraction over hd.
    att_out = jax.lax.dot_general(
        attT, wo_ref[...],
        dimension_numbers=(((0,), (0,)), ((), ())),
        preferred_element_type=f32) + bo_ref[...]          # [TQ, Dp]

    # GLU gate (glu_type == 1): sigmoid(fc1(h)) * fc2(h)
    g1 = jnp.dot(hq_b, w1_ref[...], preferred_element_type=f32) + b1_ref[...]
    g2 = jnp.dot(hq_b, w2_ref[...], preferred_element_type=f32) + b2_ref[...]
    g = jax.nn.sigmoid(g1) * g2

    # residual + LayerNorm(eps) in f32; stats over the REAL d_model
    # (padded channels of x are exact zeros by construction of the padded weights).
    x = hq + att_out + g                                   # [TQ, Dp]
    d_pad = x.shape[-1]
    inv_d = jnp.float32(1.0 / d_model_real)
    mu = jnp.sum(x, axis=-1, keepdims=True) * inv_d
    xc = x - mu
    if d_pad != d_model_real:
        col = jax.lax.broadcasted_iota(jnp.int32, (1, d_pad), 1)
        xc = jnp.where(col < d_model_real, xc, 0.0)
    var = jnp.sum(xc * xc, axis=-1, keepdims=True) * inv_d
    y = xc * jax.lax.rsqrt(var + ln_eps) * lnw_ref[...] + lnb_ref[...]

    out_ref[0] = y


# ----------------------------------------------------------------------------
# Per-generation tuning helpers
# ----------------------------------------------------------------------------
_GEN_CFG = {
    # v7x: 64 MiB VMEM -> lower limit, smaller tiles, single-buffered weights.
    "v7x": dict(q_cap=256, vmem_limit=40 * 1024 * 1024,
                tile_budget=24 * 1024 * 1024, single_buffer_weights=True),
    # v6e: 128 MiB VMEM, 2x256x256 MXU -> prefer 256/512-sized query tiles.
    "v6e": dict(q_cap=512, vmem_limit=64 * 1024 * 1024,
                tile_budget=48 * 1024 * 1024, single_buffer_weights=False),
    # v5e: HBM-bound; 128/256 tiles are enough for the 4x128x128 MXU.
    "v5e": dict(q_cap=256, vmem_limit=64 * 1024 * 1024,
                tile_budget=48 * 1024 * 1024, single_buffer_weights=False),
    "default": dict(q_cap=256, vmem_limit=48 * 1024 * 1024,
                    tile_budget=32 * 1024 * 1024, single_buffer_weights=False),
}


def _tpu_generation():
    try:
        kind = jax.devices()[0].device_kind.lower()
    except Exception:
        return "default"
    if "v7" in kind:
        return "v7x"
    if "v6" in kind:
        return "v6e"
    if "v5" in kind:
        return "v5e"
    return "default"


def _round_up(x, m):
    return (x + m - 1) // m * m


def _pad_axis(x, axis, target):
    pad = target - x.shape[axis]
    if pad == 0:
        return x
    widths = [(0, 0)] * x.ndim
    widths[axis] = (0, pad)
    return jnp.pad(x, widths)


def _pick_q_tile(L, nb_heads, d_model_p, hd, *, q_cap, vmem_budget):
    """Largest multiple-of-8 divisor of L (<= q_cap) whose live set fits the budget."""
    cands = [t for t in range(8, min(L, q_cap) + 1, 8) if L % t == 0]
    if not cands:
        cands = [L]                       # tiny / odd L: single tile

    def live_bytes(tq):
        scores = 2 * nb_heads * tq * L * 4                      # s + p (f32)
        kv_scr = 2 * hd * L * 2                                 # cached bf16 K^T / V^T
        inputs = 2 * (tq * d_model_p * 4) + 2 * (d_model_p * L * 2)  # dbl-buffered hq + hfT
        out = 2 * tq * d_model_p * 4
        return scores + kv_scr + inputs + out

    fitting = [t for t in cands if live_bytes(t) <= vmem_budget] or [cands[0]]
    best = fitting[-1]
    aligned = [t for t in fitting if t % 128 == 0]
    if aligned and aligned[-1] * 2 >= best:
        best = aligned[-1]                # prefer 128-aligned tiles when close
    return best


# ----------------------------------------------------------------------------
# Wrapper
# ----------------------------------------------------------------------------
def multi_head_attention(h, att_mask, params, *, d_head, nb_heads, q_tile=None):
    """h: [bz, L, d_model] f32;  att_mask: [bz, L] bool (True = padded key)."""
    bz, L, d_model = h.shape
    hd = d_head * nb_heads
    if d_head % 8 != 0:
        raise ValueError("this kernel requires d_head to be a multiple of 8")

    cfg = _GEN_CFG.get(_tpu_generation(), _GEN_CFG["default"])
    Dp = _round_up(d_model, 128)          # lane-dense output blocks (and GLU matmuls)

    if q_tile is None:
        q_tile = _pick_q_tile(L, nb_heads, Dp, hd,
                              q_cap=cfg["q_cap"], vmem_budget=cfg["tile_budget"])
    assert L % q_tile == 0
    n_q = L // q_tile
    scale = 1.0 / d_head ** 0.5

    bf16 = jnp.bfloat16
    (wq, bq, wkv, bkv, wo, bo, w1, b1, w2, b2, lnw, lnb) = params

    # ---- one-time wrapper-side restructuring (XLA ops, outside the kernel) ----
    # pad d_model -> Dp with zeros, split KV weight, transpose to [hd, Dp],
    # fold the 1/sqrt(d_head) softmax scale into Wq/bq, cast matmul weights to bf16.
    h_p = _pad_axis(h, 2, Dp)                                       # [bz, L, Dp] f32 (query/residual path)
    hT = jnp.transpose(h_p, (0, 2, 1)).astype(bf16)                 # [bz, Dp, L] bf16 (K/V path)
    mask3 = att_mask.astype(jnp.int32)[:, None, :]                  # [bz, 1, L]

    wq_t = (jnp.transpose(_pad_axis(wq, 0, Dp)) * scale).astype(bf16)      # [hd, Dp] (scale folded)
    bq_c = (bq * scale).reshape(hd, 1)                                     # scale folded
    wk_t = jnp.transpose(_pad_axis(wkv[:, :hd], 0, Dp)).astype(bf16)       # [hd, Dp]
    wv_t = jnp.transpose(_pad_axis(wkv[:, hd:], 0, Dp)).astype(bf16)       # [hd, Dp]
    bk_c = bkv[:hd].reshape(hd, 1)
    bv_c = bkv[hd:].reshape(hd, 1)
    wo_c = _pad_axis(wo, 1, Dp).astype(bf16)                               # [hd, Dp]
    w1_c = _pad_axis(_pad_axis(w1, 0, Dp), 1, Dp).astype(bf16)             # [Dp, Dp]
    w2_c = _pad_axis(_pad_axis(w2, 0, Dp), 1, Dp).astype(bf16)             # [Dp, Dp]
    bo_r = _pad_axis(bo, 0, Dp).reshape(1, Dp)
    b1_r = _pad_axis(b1, 0, Dp).reshape(1, Dp)
    b2_r = _pad_axis(b2, 0, Dp).reshape(1, Dp)
    lnw_r = _pad_axis(lnw, 0, Dp).reshape(1, Dp)
    lnb_r = _pad_axis(lnb, 0, Dp).reshape(1, Dp)

    kernel = functools.partial(_mha_kernel, d_head=d_head, nb_heads=nb_heads,
                               d_model_real=d_model, ln_eps=1e-6)

    def tile_map(b, qi):
        return (b, qi, 0)

    def full_map(b, qi):
        return (b, 0, 0)

    def w_map(b, qi):
        return (0, 0)

    def wspec(shape):
        # Grid-invariant weight blocks: single-buffer on VMEM-tight v7x.
        if cfg["single_buffer_weights"] and hasattr(pl, "Buffered"):
            try:
                return pl.BlockSpec(shape, w_map, pipeline_mode=pl.Buffered(1))
            except TypeError:
                pass
        return pl.BlockSpec(shape, w_map)

    grid_spec = pltpu.PrefetchScalarGridSpec(
        num_scalar_prefetch=0,
        grid=(bz, n_q),
        in_specs=[
            pl.BlockSpec((1, 1, L), full_map),                 # padding mask
            pl.BlockSpec((1, q_tile, Dp), tile_map),           # h (query rows, f32)
            pl.BlockSpec((1, Dp, L), full_map),                # h^T (bf16, K/V path)
            wspec((hd, Dp)), wspec((hd, 1)),                   # Wq^T (scaled), bq (scaled)
            wspec((hd, Dp)), wspec((hd, 1)),                   # Wk^T, bk
            wspec((hd, Dp)), wspec((hd, 1)),                   # Wv^T, bv
            wspec((hd, Dp)), wspec((1, Dp)),                   # Wo, bo
            wspec((Dp, Dp)), wspec((1, Dp)),                   # W1, b1
            wspec((Dp, Dp)), wspec((1, Dp)),                   # W2, b2
            wspec((1, Dp)), wspec((1, Dp)),                    # ln weight, ln bias
        ],
        out_specs=pl.BlockSpec((1, q_tile, Dp), tile_map),
        scratch_shapes=[pltpu.VMEM((hd, L), jnp.bfloat16),     # cached K^T
                        pltpu.VMEM((hd, L), jnp.bfloat16)],    # cached V^T
    )

    out = pl.pallas_call(
        kernel,
        out_shape=jax.ShapeDtypeStruct((bz, L, Dp), jnp.float32),
        grid_spec=grid_spec,
        compiler_params=pltpu.CompilerParams(
            # qi MUST be innermost and 'arbitrary': the K/V scratch is filled at qi==0
            # and carried across the qi sweep (megacore shards only the batch axis).
            dimension_semantics=("parallel", "arbitrary"),
            vmem_limit_bytes=cfg["vmem_limit"]),
    )(mask3, h_p, hT, wq_t, bq_c, wk_t, bk_c, wv_t, bv_c,
      wo_c, bo_r, w1_c, b1_r, w2_c, b2_r, lnw_r, lnb_r)

    return out[..., :d_model] if Dp != d_model else out


# ----------------------------------------------------------------------------
# Deterministic parameter init (shapes from MultiHeadAttention.__init__)
# ----------------------------------------------------------------------------
def _xavier_uniform(key, fan_in, fan_out, gain=1.0):
    bound = gain * np.sqrt(6.0 / (fan_in + fan_out))
    # stored as (in_features, out_features)
    return jax.random.uniform(key, (fan_in, fan_out), jnp.float32, -bound, bound)


def init_params(key, d_model, d_head, nb_heads):
    hd = d_head * nb_heads
    ks = jax.random.split(key, 10)
    g = 1.0 / np.sqrt(2.0)
    wq = _xavier_uniform(ks[0], d_model, hd, gain=g)
    bq = jax.random.uniform(ks[1], (hd,), jnp.float32, -0.05, 0.05)
    wkv = _xavier_uniform(ks[2], d_model, 2 * hd, gain=g)
    bkv = jax.random.uniform(ks[3], (2 * hd,), jnp.float32, -0.05, 0.05)
    wo = _xavier_uniform(ks[4], hd, d_model, gain=1.0)
    bo = jax.random.uniform(ks[5], (d_model,), jnp.float32, -0.05, 0.05)
    w1 = _xavier_uniform(ks[6], d_model, d_model, gain=1.0)
    b1 = jax.random.uniform(ks[7], (d_model,), jnp.float32, -0.05, 0.05)
    w2 = _xavier_uniform(ks[8], d_model, d_model, gain=1.0)
    b2 = jax.random.uniform(ks[9], (d_model,), jnp.float32, -0.05, 0.05)
    lnw = jnp.ones((d_model,), jnp.float32)
    lnb = jnp.zeros((d_model,), jnp.float32)
    return (wq, bq, wkv, bkv, wo, bo, w1, b1, w2, b2, lnw, lnb)


# ----------------------------------------------------------------------------
# Pure-JAX f32 reference (mirrors the PyTorch forward in eval mode)
# ----------------------------------------------------------------------------
def reference(h, att_mask, params, *, d_head, nb_heads):
    (wq, bq, wkv, bkv, wo, bo, w1, b1, w2, b2, lnw, lnb) = params
    bz, L, d_model = h.shape
    hd = d_head * nb_heads
    scale = 1.0 / d_head ** 0.5

    head_q = h @ wq + bq
    head_kv = h @ wkv + bkv
    head_k, head_v = head_kv[..., :hd], head_kv[..., hd:]

    def split_heads(x):                                    # [bz, L, hd] -> [bz, H, L, dh]
        return x.reshape(bz, L, nb_heads, d_head).transpose(0, 2, 1, 3)

    qf, kf, vf = split_heads(head_q), split_heads(head_k), split_heads(head_v)
    att = jnp.einsum('bhqd,bhkd->bhqk', qf, kf) * scale
    att = jnp.where(att_mask[:, None, None, :], -1000000000.0, att)
    p = jax.nn.softmax(att, axis=-1)
    av = jnp.einsum('bhqk,bhkd->bhqd', p, vf)
    att_vec = av.transpose(0, 2, 1, 3).reshape(bz, L, hd)
    att_out = att_vec @ wo + bo

    g = jax.nn.sigmoid(h @ w1 + b1) * (h @ w2 + b2)
    x = h + att_out + g
    mu = jnp.mean(x, axis=-1, keepdims=True)
    var = jnp.mean((x - mu) ** 2, axis=-1, keepdims=True)
    return (x - mu) / jnp.sqrt(var + 1e-6) * lnw + lnb


# ----------------------------------------------------------------------------
if __name__ == "__main__":
    bz, L, d_model, nb_heads, d_head = 2, 8, 32, 4, 8

    key = jax.random.PRNGKey(0)
    k_h, k_p = jax.random.split(key)
    h = jax.random.normal(k_h, (bz, L, d_model), jnp.float32)

    # padding mask: last two positions of batch element 1 are padded
    att_mask = jnp.zeros((bz, L), dtype=bool).at[1, -2:].set(True)

    params = init_params(k_p, d_model, d_head, nb_heads)

    out = multi_head_attention(h, att_mask, params,
                               d_head=d_head, nb_heads=nb_heads)
    out = jax.block_until_ready(out)

    ref = reference(h, att_mask, params, d_head=d_head, nb_heads=nb_heads)
    # bf16 matmul operands with f32 accumulation + approx reciprocal -> relaxed tol.
    np.testing.assert_allclose(np.asarray(out), np.asarray(ref),
                               rtol=3e-2, atol=3e-2)
    print("KERNEL_OK")
</pallas_src>

<mosaic_0001>
module attributes {stable_mosaic.version = 11 : i64} {
  func.func @_mha_kernel(%arg0: i32, %arg1: i32, %arg2: memref<1x1x8xi32, #tpu.memory_space<vmem>>, %arg3: memref<1x8x128xf32, #tpu.memory_space<vmem>>, %arg4: memref<1x128x8xbf16, #tpu.memory_space<vmem>>, %arg5: memref<32x128xbf16, #tpu.memory_space<vmem>>, %arg6: memref<32x1xf32, #tpu.memory_space<vmem>>, %arg7: memref<32x128xbf16, #tpu.memory_space<vmem>>, %arg8: memref<32x1xf32, #tpu.memory_space<vmem>>, %arg9: memref<32x128xbf16, #tpu.memory_space<vmem>>, %arg10: memref<32x1xf32, #tpu.memory_space<vmem>>, %arg11: memref<32x128xbf16, #tpu.memory_space<vmem>>, %arg12: memref<1x128xf32, #tpu.memory_space<vmem>>, %arg13: memref<128x128xbf16, #tpu.memory_space<vmem>>, %arg14: memref<1x128xf32, #tpu.memory_space<vmem>>, %arg15: memref<128x128xbf16, #tpu.memory_space<vmem>>, %arg16: memref<1x128xf32, #tpu.memory_space<vmem>>, %arg17: memref<1x128xf32, #tpu.memory_space<vmem>>, %arg18: memref<1x128xf32, #tpu.memory_space<vmem>>, %arg19: memref<1x8x128xf32, #tpu.memory_space<vmem>>, %arg20: memref<32x8xbf16, #tpu.memory_space<vmem>>, %arg21: memref<32x8xbf16, #tpu.memory_space<vmem>>) attributes {dimension_semantics = [#tpu.dimension_semantics<parallel>, #tpu.dimension_semantics<arbitrary>], iteration_bounds = array<i64: 2, 1>, scalar_prefetch = 0 : i64, scratch_operands = 2 : i64, tpu.core_type = #tpu.core_type<tc>, window_params = [{transform_indices = @transform_0, window_bounds = array<i64: 1, 1, 8>}, {transform_indices = @transform_1, window_bounds = array<i64: 1, 8, 128>}, {transform_indices = @transform_2, window_bounds = array<i64: 1, 128, 8>}, {pipeline_mode = #tpu.pipeline_mode<synchronous>, transform_indices = @transform_3, window_bounds = array<i64: 32, 128>}, {pipeline_mode = #tpu.pipeline_mode<synchronous>, transform_indices = @transform_4, window_bounds = array<i64: 32, 1>}, {pipeline_mode = #tpu.pipeline_mode<synchronous>, transform_indices = @transform_5, window_bounds = array<i64: 32, 128>}, {pipeline_mode = #tpu.pipeline_mode<synchronous>, transform_indices = @transform_6, window_bounds = array<i64: 32, 1>}, {pipeline_mode = #tpu.pipeline_mode<synchronous>, transform_indices = @transform_7, window_bounds = array<i64: 32, 128>}, {pipeline_mode = #tpu.pipeline_mode<synchronous>, transform_indices = @transform_8, window_bounds = array<i64: 32, 1>}, {pipeline_mode = #tpu.pipeline_mode<synchronous>, transform_indices = @transform_9, window_bounds = array<i64: 32, 128>}, {pipeline_mode = #tpu.pipeline_mode<synchronous>, transform_indices = @transform_10, window_bounds = array<i64: 1, 128>}, {pipeline_mode = #tpu.pipeline_mode<synchronous>, transform_indices = @transform_11, window_bounds = array<i64: 128, 128>}, {pipeline_mode = #tpu.pipeline_mode<synchronous>, transform_indices = @transform_12, window_bounds = array<i64: 1, 128>}, {pipeline_mode = #tpu.pipeline_mode<synchronous>, transform_indices = @transform_13, window_bounds = array<i64: 128, 128>}, {pipeline_mode = #tpu.pipeline_mode<synchronous>, transform_indices = @transform_14, window_bounds = array<i64: 1, 128>}, {pipeline_mode = #tpu.pipeline_mode<synchronous>, transform_indices = @transform_15, window_bounds = array<i64: 1, 128>}, {pipeline_mode = #tpu.pipeline_mode<synchronous>, transform_indices = @transform_16, window_bounds = array<i64: 1, 128>}, {transform_indices = @transform_17, window_bounds = array<i64: 1, 8, 128>}]} {
    %c0_i32 = arith.constant 0 : i32
    %0 = arith.cmpi eq, %arg1, %c0_i32 : i32
    %1 = arith.extui %0 : i1 to i32
    %c0_i32_0 = arith.constant 0 : i32
    %2 = arith.cmpi ne, %1, %c0_i32_0 : i32
    scf.if %2 {
      %c0_49 = arith.constant 0 : index
      %c0_50 = arith.constant 0 : index
      %c0_51 = arith.constant 0 : index
      %97 = vector.load %arg4[%c0_49, %c0_50, %c0_51] : memref<1x128x8xbf16, #tpu.memory_space<vmem>>, vector<1x128x8xbf16>
      %98 = vector.shape_cast %97 : vector<1x128x8xbf16> to vector<128x8xbf16>
      %c0_52 = arith.constant 0 : index
      %c0_53 = arith.constant 0 : index
      %99 = vector.load %arg7[%c0_52, %c0_53] : memref<32x128xbf16, #tpu.memory_space<vmem>>, vector<32x128xbf16>
      %cst_54 = arith.constant dense<0.000000e+00> : vector<32x8xf32>
      %100 = tpu.matmul %99, %98, %cst_54 {dimension_numbers = #tpu.dot_dimension_numbers<[1], [0], [0], [1], [0, 0, 1, 1], [], []>} : vector<32x128xbf16>, vector<128x8xbf16>, vector<32x8xf32> -> vector<32x8xf32>
      %c0_55 = arith.constant 0 : index
      %c0_56 = arith.constant 0 : index
      %101 = vector.load %arg8[%c0_55, %c0_56] : memref<32x1xf32, #tpu.memory_space<vmem>>, vector<32x1xf32>
      %102 = vector.broadcast %101 : vector<32x1xf32> to vector<32x8xf32>
      %103 = arith.addf %100, %102 : vector<32x8xf32>
      %c0_57 = arith.constant 0 : index
      %c0_58 = arith.constant 0 : index
      %104 = vector.load %arg9[%c0_57, %c0_58] : memref<32x128xbf16, #tpu.memory_space<vmem>>, vector<32x128xbf16>
      %cst_59 = arith.constant dense<0.000000e+00> : vector<32x8xf32>
      %105 = tpu.matmul %104, %98, %cst_59 {dimension_numbers = #tpu.dot_dimension_numbers<[1], [0], [0], [1], [0, 0, 1, 1], [], []>} : vector<32x128xbf16>, vector<128x8xbf16>, vector<32x8xf32> -> vector<32x8xf32>
      %c0_60 = arith.constant 0 : index
      %c0_61 = arith.constant 0 : index
      %106 = vector.load %arg10[%c0_60, %c0_61] : memref<32x1xf32, #tpu.memory_space<vmem>>, vector<32x1xf32>
      %107 = vector.broadcast %106 : vector<32x1xf32> to vector<32x8xf32>
      %108 = arith.addf %105, %107 : vector<32x8xf32>
      %109 = arith.truncf %103 : vector<32x8xf32> to vector<32x8xbf16>
      %c0_62 = arith.constant 0 : index
      %c0_63 = arith.constant 0 : index
      %110 = vector.load %arg20[%c0_62, %c0_63] : memref<32x8xbf16, #tpu.memory_space<vmem>>, vector<32x8xbf16>
      tpu.vector_store %arg20[%c0_62, %c0_63], %109 {strides = array<i32>} : memref<32x8xbf16, #tpu.memory_space<vmem>>, vector<32x8xbf16>,
      %111 = arith.truncf %108 : vector<32x8xf32> to vector<32x8xbf16>
      %c0_64 = arith.constant 0 : index
      %c0_65 = arith.constant 0 : index
      %112 = vector.load %arg21[%c0_64, %c0_65] : memref<32x8xbf16, #tpu.memory_space<vmem>>, vector<32x8xbf16>
      tpu.vector_store %arg21[%c0_64, %c0_65], %111 {strides = array<i32>} : memref<32x8xbf16, #tpu.memory_space<vmem>>, vector<32x8xbf16>,
    } else {
    }
    %c0 = arith.constant 0 : index
    %c0_1 = arith.constant 0 : index
    %c0_2 = arith.constant 0 : index
    %3 = vector.load %arg3[%c0, %c0_1, %c0_2] : memref<1x8x128xf32, #tpu.memory_space<vmem>>, vector<1x8x128xf32>
    %4 = vector.shape_cast %3 : vector<1x8x128xf32> to vector<8x128xf32>
    %5 = arith.truncf %4 : vector<8x128xf32> to vector<8x128xbf16>
    %6 = tpu.transpose %5, [1, 0] : vector<8x128xbf16> -> vector<128x8xbf16>
    %c0_3 = arith.constant 0 : index
    %c0_4 = arith.constant 0 : index
    %7 = vector.load %arg5[%c0_3, %c0_4] : memref<32x128xbf16, #tpu.memory_space<vmem>>, vector<32x128xbf16>
    %cst = arith.constant dense<0.000000e+00> : vector<32x8xf32>
    %8 = tpu.matmul %7, %6, %cst {dimension_numbers = #tpu.dot_dimension_numbers<[1], [0], [0], [1], [0, 0, 1, 1], [], []>} : vector<32x128xbf16>, vector<128x8xbf16>, vector<32x8xf32> -> vector<32x8xf32>
    %c0_5 = arith.constant 0 : index
    %c0_6 = arith.constant 0 : index
    %9 = vector.load %arg6[%c0_5, %c0_6] : memref<32x1xf32, #tpu.memory_space<vmem>>, vector<32x1xf32>
    %10 = vector.broadcast %9 : vector<32x1xf32> to vector<32x8xf32>
    %11 = arith.addf %8, %10 : vector<32x8xf32>
    %12 = arith.truncf %11 : vector<32x8xf32> to vector<32x8xbf16>
    %13 = vector.shape_cast %12 : vector<32x8xbf16> to vector<4x8x8xbf16>
    %c0_7 = arith.constant 0 : index
    %c0_8 = arith.constant 0 : index
    %14 = vector.load %arg20[%c0_7, %c0_8] : memref<32x8xbf16, #tpu.memory_space<vmem>>, vector<32x8xbf16>
    %15 = vector.shape_cast %14 : vector<32x8xbf16> to vector<4x8x8xbf16>
    %c0_9 = arith.constant 0 : index
    %c0_10 = arith.constant 0 : index
    %16 = vector.load %arg21[%c0_9, %c0_10] : memref<32x8xbf16, #tpu.memory_space<vmem>>, vector<32x8xbf16>
    %17 = vector.shape_cast %16 : vector<32x8xbf16> to vector<4x8x8xbf16>
    "tpu.trace_start"() <{level = 10 : i32, message = "hdq,hdk->hqk"}> : () -> ()
    %cst_11 = arith.constant dense<0.000000e+00> : vector<4x8x8xf32>
    %18 = tpu.matmul %13, %15, %cst_11 {dimension_numbers = #tpu.dot_dimension_numbers<[1], [1], [2], [2], [0, 0, 0, 2, 1, 2], [0], [0]>} : vector<4x8x8xbf16>, vector<4x8x8xbf16>, vector<4x8x8xf32> -> vector<4x8x8xf32>
    "tpu.trace_stop"() : () -> ()
    %c0_12 = arith.constant 0 : index
    %c0_13 = arith.constant 0 : index
    %c0_14 = arith.constant 0 : index
    %19 = vector.load %arg2[%c0_12, %c0_13, %c0_14] : memref<1x1x8xi32, #tpu.memory_space<vmem>>, vector<1x1x8xi32>
    %20 = vector.shape_cast %19 : vector<1x1x8xi32> to vector<1x8xi32>
    %c0_i32_15 = arith.constant 0 : i32
    %21 = vector.broadcast %c0_i32_15 : i32 to vector<1x8xi32>
    %22 = arith.cmpi ne, %20, %21 : vector<1x8xi32>
    %23 = vector.shape_cast %22 : vector<1x8xi1> to vector<1x1x8xi1>
    %cst_16 = arith.constant -1.000000e+09 : f32
    %24 = vector.shape_cast %23 : vector<1x1x8xi1> to vector<1x1x8xi1>
    %25 = vector.broadcast %24 : vector<1x1x8xi1> to vector<4x8x8xi1>
    %26 = vector.broadcast %cst_16 : f32 to vector<4x8x8xf32>
    %27 = arith.select %25, %26, %18 : vector<4x8x8xi1>, vector<4x8x8xf32>
    %cst_17 = arith.constant dense<0xFF800000> : vector<4x8xf32>
    %28 = vector.multi_reduction <maximumf>, %27, %cst_17 [2] : vector<4x8x8xf32> to vector<4x8xf32>
    %29 = vector.shape_cast %28 : vector<4x8xf32> to vector<4x8x1xf32>
    %30 = vector.broadcast %29 : vector<4x8x1xf32> to vector<4x8x8xf32>
    %31 = arith.subf %27, %30 : vector<4x8x8xf32>
    %32 = math.exp %31 : vector<4x8x8xf32>
    %cst_18 = arith.constant dense<0.000000e+00> : vector<4x8xf32>
    %33 = vector.multi_reduction <add>, %32, %cst_18 [2] : vector<4x8x8xf32> to vector<4x8xf32>
    %34 = vector.shape_cast %33 : vector<4x8xf32> to vector<4x8x1xf32>
    %35 = tpu.reciprocal %34 {approx = true} : vector<4x8x1xf32> -> vector<4x8x1xf32>
    %36 = vector.broadcast %35 : vector<4x8x1xf32> to vector<4x8x8xf32>
    %37 = arith.mulf %32, %36 : vector<4x8x8xf32>
    %38 = arith.truncf %37 : vector<4x8x8xf32> to vector<4x8x8xbf16>
    "tpu.trace_start"() <{level = 10 : i32, message = "hdk,hqk->hdq"}> : () -> ()
    %cst_19 = arith.constant dense<0.000000e+00> : vector<4x8x8xf32>
    %39 = tpu.matmul %17, %38, %cst_19 {dimension_numbers = #tpu.dot_dimension_numbers<[2], [2], [1], [1], [0, 0, 0, 1, 1, 1], [0], [0]>} : vector<4x8x8xbf16>, vector<4x8x8xbf16>, vector<4x8x8xf32> -> vector<4x8x8xf32>
    "tpu.trace_stop"() : () -> ()
    %40 = arith.truncf %39 : vector<4x8x8xf32> to vector<4x8x8xbf16>
    %41 = vector.shape_cast %40 : vector<4x8x8xbf16> to vector<32x8xbf16>
    %c0_20 = arith.constant 0 : index
    %c0_21 = arith.constant 0 : index
    %42 = vector.load %arg11[%c0_20, %c0_21] : memref<32x128xbf16, #tpu.memory_space<vmem>>, vector<32x128xbf16>
    %cst_22 = arith.constant dense<0.000000e+00> : vector<8x128xf32>
    %43 = tpu.matmul %41, %42, %cst_22 {dimension_numbers = #tpu.dot_dimension_numbers<[0], [0], [1], [1], [0, 1, 1, 1], [], []>} : vector<32x8xbf16>, vector<32x128xbf16>, vector<8x128xf32> -> vector<8x128xf32>
    %c0_23 = arith.constant 0 : index
    %c0_24 = arith.constant 0 : index
    %44 = vector.load %arg12[%c0_23, %c0_24] : memref<1x128xf32, #tpu.memory_space<vmem>>, vector<1x128xf32>
    %45 = vector.broadcast %44 : vector<1x128xf32> to vector<8x128xf32>
    %46 = arith.addf %43, %45 : vector<8x128xf32>
    %c0_25 = arith.constant 0 : index
    %c0_26 = arith.constant 0 : index
    %47 = vector.load %arg13[%c0_25, %c0_26] : memref<128x128xbf16, #tpu.memory_space<vmem>>, vector<128x128xbf16>
    %cst_27 = arith.constant dense<0.000000e+00> : vector<8x128xf32>
    %48 = tpu.matmul %5, %47, %cst_27 {dimension_numbers = #tpu.dot_dimension_numbers<[1], [0], [0], [1], [0, 0, 1, 1], [], []>} : vector<8x128xbf16>, vector<128x128xbf16>, vector<8x128xf32> -> vector<8x128xf32>
    %c0_28 = arith.constant 0 : index
    %c0_29 = arith.constant 0 : index
    %49 = vector.load %arg14[%c0_28, %c0_29] : memref<1x128xf32, #tpu.memory_space<vmem>>, vector<1x128xf32>
    %50 = vector.broadcast %49 : vector<1x128xf32> to vector<8x128xf32>
    %51 = arith.addf %48, %50 : vector<8x128xf32>
    %c0_30 = arith.constant 0 : index
    %c0_31 = arith.constant 0 : index
    %52 = vector.load %arg15[%c0_30, %c0_31] : memref<128x128xbf16, #tpu.memory_space<vmem>>, vector<128x128xbf16>
    %cst_32 = arith.constant dense<0.000000e+00> : vector<8x128xf32>
    %53 = tpu.matmul %5, %52, %cst_32 {dimension_numbers = #tpu.dot_dimension_numbers<[1], [0], [0], [1], [0, 0, 1, 1], [], []>} : vector<8x128xbf16>, vector<128x128xbf16>, vector<8x128xf32> -> vector<8x128xf32>
    %c0_33 = arith.constant 0 : index
    %c0_34 = arith.constant 0 : index
    %54 = vector.load %arg16[%c0_33, %c0_34] : memref<1x128xf32, #tpu.memory_space<vmem>>, vector<1x128xf32>
    %55 = vector.broadcast %54 : vector<1x128xf32> to vector<8x128xf32>
    %56 = arith.addf %53, %55 : vector<8x128xf32>
    %57 = arith.negf %51 : vector<8x128xf32>
    %58 = math.exp %57 : vector<8x128xf32>
    %cst_35 = arith.constant 1.000000e+00 : f32
    %59 = vector.broadcast %cst_35 : f32 to vector<8x128xf32>
    %60 = arith.addf %59, %58 : vector<8x128xf32>
    %61 = arith.divf %59, %60 : vector<8x128xf32>
    %62 = arith.mulf %61, %56 : vector<8x128xf32>
    %63 = arith.addf %4, %46 : vector<8x128xf32>
    %64 = arith.addf %63, %62 : vector<8x128xf32>
    %cst_36 = arith.constant dense<0.000000e+00> : vector<8xf32>
    %65 = vector.multi_reduction <add>, %64, %cst_36 [1] : vector<8x128xf32> to vector<8xf32>
    %66 = vector.shape_cast %65 : vector<8xf32> to vector<8x1xf32>
    %cst_37 = arith.constant 3.125000e-02 : f32
    %67 = vector.broadcast %cst_37 : f32 to vector<8x1xf32>
    %68 = arith.mulf %66, %67 : vector<8x1xf32>
    %69 = vector.broadcast %68 : vector<8x1xf32> to vector<8x128xf32>
    %70 = arith.subf %64, %69 : vector<8x128xf32>
    %71 = tpu.iota {dimensions = array<i32: 1>} : vector<1x128xi32>
    %c32_i32 = arith.constant 32 : i32
    %72 = vector.broadcast %c32_i32 : i32 to vector<1x128xi32>
    %73 = arith.cmpi slt, %71, %72 : vector<1x128xi32>
    %cst_38 = arith.constant 0.000000e+00 : f32
    %74 = vector.shape_cast %73 : vector<1x128xi1> to vector<1x128xi1>
    %75 = vector.broadcast %74 : vector<1x128xi1> to vector<8x128xi1>
    %76 = vector.broadcast %cst_38 : f32 to vector<8x128xf32>
    %77 = arith.select %75, %70, %76 : vector<8x128xi1>, vector<8x128xf32>
    %78 = arith.mulf %77, %77 : vector<8x128xf32>
    %cst_39 = arith.constant dense<0.000000e+00> : vector<8xf32>
    %79 = vector.multi_reduction <add>, %78, %cst_39 [1] : vector<8x128xf32> to vector<8xf32>
    %80 = vector.shape_cast %79 : vector<8xf32> to vector<8x1xf32>
    %cst_40 = arith.constant 3.125000e-02 : f32
    %81 = vector.broadcast %cst_40 : f32 to vector<8x1xf32>
    %82 = arith.mulf %80, %81 : vector<8x1xf32>
    %cst_41 = arith.constant 9.99999997E-7 : f32
    %83 = vector.broadcast %cst_41 : f32 to vector<8x1xf32>
    %84 = arith.addf %82, %83 : vector<8x1xf32>
    %85 = math.rsqrt %84 : vector<8x1xf32>
    %86 = vector.broadcast %85 : vector<8x1xf32> to vector<8x128xf32>
    %87 = arith.mulf %77, %86 : vector<8x128xf32>
    %c0_42 = arith.constant 0 : index
    %c0_43 = arith.constant 0 : index
    %88 = vector.load %arg17[%c0_42, %c0_43] : memref<1x128xf32, #tpu.memory_space<vmem>>, vector<1x128xf32>
    %89 = vector.broadcast %88 : vector<1x128xf32> to vector<8x128xf32>
    %90 = arith.mulf %87, %89 : vector<8x128xf32>
    %c0_44 = arith.constant 0 : index
    %c0_45 = arith.constant 0 : index
    %91 = vector.load %arg18[%c0_44, %c0_45] : memref<1x128xf32, #tpu.memory_space<vmem>>, vector<1x128xf32>
    %92 = vector.broadcast %91 : vector<1x128xf32> to vector<8x128xf32>
    %93 = arith.addf %90, %92 : vector<8x128xf32>
    %c0_46 = arith.constant 0 : index
    %c0_47 = arith.constant 0 : index
    %c0_48 = arith.constant 0 : index
    %94 = vector.load %arg19[%c0_46, %c0_47, %c0_48] : memref<1x8x128xf32, #tpu.memory_space<vmem>>, vector<1x8x128xf32>
    %95 = vector.shape_cast %94 : vector<1x8x128xf32> to vector<8x128xf32>
    %96 = vector.shape_cast %93 : vector<8x128xf32> to vector<1x8x128xf32>
    tpu.vector_store %arg19[%c0_46, %c0_47, %c0_48], %96 {strides = array<i32>} : memref<1x8x128xf32, #tpu.memory_space<vmem>>, vector<1x8x128xf32>,
    return
  }
  func.func @transform_0(%arg0: i32, %arg1: i32) -> (i32, i32, i32) {
    %c0_i32 = arith.constant 0 : i32
    %c0_i32_0 = arith.constant 0 : i32
    %c0_i32_1 = arith.constant 0 : i32
    return %arg0, %c0_i32, %c0_i32_0 : i32, i32, i32
  }
  func.func @transform_1(%arg0: i32, %arg1: i32) -> (i32, i32, i32) {
    %c0_i32 = arith.constant 0 : i32
    %c0_i32_0 = arith.constant 0 : i32
    return %arg0, %arg1, %c0_i32 : i32, i32, i32
  }
  func.func @transform_2(%arg0: i32, %arg1: i32) -> (i32, i32, i32) {
    %c0_i32 = arith.constant 0 : i32
    %c0_i32_0 = arith.constant 0 : i32
    %c0_i32_1 = arith.constant 0 : i32
    return %arg0, %c0_i32, %c0_i32_0 : i32, i32, i32
  }
  func.func @transform_3(%arg0: i32, %arg1: i32) -> (i32, i32) {
    %c0_i32 = arith.constant 0 : i32
    %c0_i32_0 = arith.constant 0 : i32
    %c0_i32_1 = arith.constant 0 : i32
    return %c0_i32, %c0_i32_0 : i32, i32
  }
  func.func @transform_4(%arg0: i32, %arg1: i32) -> (i32, i32) {
    %c0_i32 = arith.constant 0 : i32
    %c0_i32_0 = arith.constant 0 : i32
    %c0_i32_1 = arith.constant 0 : i32
    return %c0_i32, %c0_i32_0 : i32, i32
  }
  func.func @transform_5(%arg0: i32, %arg1: i32) -> (i32, i32) {
    %c0_i32 = arith.constant 0 : i32
    %c0_i32_0 = arith.constant 0 : i32
    %c0_i32_1 = arith.constant 0 : i32
    return %c0_i32, %c0_i32_0 : i32, i32
  }
  func.func @transform_6(%arg0: i32, %arg1: i32) -> (i32, i32) {
    %c0_i32 = arith.constant 0 : i32
    %c0_i32_0 = arith.constant 0 : i32
    %c0_i32_1 = arith.constant 0 : i32
    return %c0_i32, %c0_i32_0 : i32, i32
  }
  func.func @transform_7(%arg0: i32, %arg1: i32) -> (i32, i32) {
    %c0_i32 = arith.constant 0 : i32
    %c0_i32_0 = arith.constant 0 : i32
    %c0_i32_1 = arith.constant 0 : i32
    return %c0_i32, %c0_i32_0 : i32, i32
  }
  func.func @transform_8(%arg0: i32, %arg1: i32) -> (i32, i32) {
    %c0_i32 = arith.constant 0 : i32
    %c0_i32_0 = arith.constant 0 : i32
    %c0_i32_1 = arith.constant 0 : i32
    return %c0_i32, %c0_i32_0 : i32, i32
  }
  func.func @transform_9(%arg0: i32, %arg1: i32) -> (i32, i32) {
    %c0_i32 = arith.constant 0 : i32
    %c0_i32_0 = arith.constant 0 : i32
    %c0_i32_1 = arith.constant 0 : i32
    return %c0_i32, %c0_i32_0 : i32, i32
  }
  func.func @transform_10(%arg0: i32, %arg1: i32) -> (i32, i32) {
    %c0_i32 = arith.constant 0 : i32
    %c0_i32_0 = arith.constant 0 : i32
    %c0_i32_1 = arith.constant 0 : i32
    return %c0_i32, %c0_i32_0 : i32, i32
  }
  func.func @transform_11(%arg0: i32, %arg1: i32) -> (i32, i32) {
    %c0_i32 = arith.constant 0 : i32
    %c0_i32_0 = arith.constant 0 : i32
    %c0_i32_1 = arith.constant 0 : i32
    return %c0_i32, %c0_i32_0 : i32, i32
  }
  func.func @transform_12(%arg0: i32, %arg1: i32) -> (i32, i32) {
    %c0_i32 = arith.constant 0 : i32
    %c0_i32_0 = arith.constant 0 : i32
    %c0_i32_1 = arith.constant 0 : i32
    return %c0_i32, %c0_i32_0 : i32, i32
  }
  func.func @transform_13(%arg0: i32, %arg1: i32) -> (i32, i32) {
    %c0_i32 = arith.constant 0 : i32
    %c0_i32_0 = arith.constant 0 : i32
    %c0_i32_1 = arith.constant 0 : i32
    return %c0_i32, %c0_i32_0 : i32, i32
  }
  func.func @transform_14(%arg0: i32, %arg1: i32) -> (i32, i32) {
    %c0_i32 = arith.constant 0 : i32
    %c0_i32_0 = arith.constant 0 : i32
    %c0_i32_1 = arith.constant 0 : i32
    return %c0_i32, %c0_i32_0 : i32, i32
  }
  func.func @transform_15(%arg0: i32, %arg1: i32) -> (i32, i32) {
    %c0_i32 = arith.constant 0 : i32
    %c0_i32_0 = arith.constant 0 : i32
    %c0_i32_1 = arith.constant 0 : i32
    return %c0_i32, %c0_i32_0 : i32, i32
  }
  func.func @transform_16(%arg0: i32, %arg1: i32) -> (i32, i32) {
    %c0_i32 = arith.constant 0 : i32
    %c0_i32_0 = arith.constant 0 : i32
    %c0_i32_1 = arith.constant 0 : i32
    return %c0_i32, %c0_i32_0 : i32, i32
  }
  func.func @transform_17(%arg0: i32, %arg1: i32) -> (i32, i32, i32) {
    %c0_i32 = arith.constant 0 : i32
    %c0_i32_0 = arith.constant 0 : i32
    return %arg0, %arg1, %c0_i32 : i32, i32, i32
  }
}

</mosaic_0001>

<llo_original>
// kernel: tpu_custom_call.1
$region0: #{tpu_custom_call.1}
  #allocation0 [shape = 'u32[]', space=smem, size = 0x4, offset = 0x4, fixed_abs, tag = 'smem constant byte address 0x4 - core index']
  #allocation1 [shape = 'u32[144,128]{1,0:T(1,128)}', space=vmem, size = 0x12000, scoped, tag = 'internal scratch']
  #allocation2 [shape = 'bf16[32,8]{1,0:T(16,128)(2,1)}', space=vmem, size = 0x2000, scoped, tag = 'scratch operand']
  #allocation3 [shape = 'bf16[32,8]{1,0:T(16,128)(2,1)}', space=vmem, size = 0x2000, scoped, tag = 'scratch operand']
  %s0 = inlined_call_operand.vmem [shape: s32[2,1,8], index: 0, kind: input, shape index: {}]
  %s1 = inlined_call_operand.vmem [shape: f32[2,8,128], index: 1, kind: input, shape index: {}]
  %s2 = inlined_call_operand.vmem [shape: bf16[2,128,8], index: 2, kind: input, shape index: {}]
  %s3 = inlined_call_operand.vmem [shape: bf16[32,128], index: 3, kind: input, shape index: {}]
  %s4 = inlined_call_operand.vmem [shape: f32[32,1], index: 4, kind: input, shape index: {}]
  %s5 = inlined_call_operand.vmem [shape: bf16[32,128], index: 5, kind: input, shape index: {}]
  %s6 = inlined_call_operand.vmem [shape: f32[32,1], index: 6, kind: input, shape index: {}]
  %s7 = inlined_call_operand.vmem [shape: bf16[32,128], index: 7, kind: input, shape index: {}]
  %s8 = inlined_call_operand.vmem [shape: f32[32,1], index: 8, kind: input, shape index: {}]
  %s9 = inlined_call_operand.vmem [shape: bf16[32,128], index: 9, kind: input, shape index: {}]
  %s10 = inlined_call_operand.vmem [shape: f32[1,128], index: 10, kind: input, shape index: {}]
  %s11 = inlined_call_operand.vmem [shape: bf16[128,128], index: 11, kind: input, shape index: {}]
  %s12 = inlined_call_operand.vmem [shape: f32[1,128], index: 12, kind: input, shape index: {}]
  %s13 = inlined_call_operand.vmem [shape: bf16[128,128], index: 13, kind: input, shape index: {}]
  %s14 = inlined_call_operand.vmem [shape: f32[1,128], index: 14, kind: input, shape index: {}]
  %s15 = inlined_call_operand.vmem [shape: f32[1,128], index: 15, kind: input, shape index: {}]
  %s16 = inlined_call_operand.vmem [shape: f32[1,128], index: 16, kind: input, shape index: {}]
  %s17 = inlined_call_operand.hbm [shape: f32[2,8,128], index: 17, kind: output, shape index: {}]
  %s18 = sld [smem:[#allocation0]]
  $region105: #{tpu_custom_call.1} parent=0
    _
  %s20 = ssub.s32 1, %s18
  %s21 = scalar_select 0, %s20, %s18
  $region1: #{tpu_custom_call.1} parent=0
    #allocation4 [shape = 'u8[8192]{0}', space=vmem, size = 0x2000, scoped, tag = 'output window, operand 0']
    #allocation5 [shape = 's32[2]{0}', space=sflag, size = 0x8, scoped, tag = 'scoped memory for tpu_custom_call.1']
    %22 = vsyncpa [#allocation5], 0
    %s23 = scalar_lea.sflag [#allocation5], 1
    %24 = vsyncpa %s23, 0
    loop: start=0, step=1, limit=4
    $region2: #{tpu_custom_call.1} parent=1 // loop_pre_header
      _
    $region3: #{tpu_custom_call.1} parent=1 // loop_header
      %s26 = sphi 0, %s30
      %p27 = scmp.ge.s32.totalorder %s26, 4
      %s33 = sphi 0, %s45
      %s34 = sphi 0, %s41
      %s35 = sphi 0, %s33
      %s36 = sphi 0, %s34
      %s37 = sphi 0, %s35
      %s38 = sphi 0, %s36
      %s48 = sphi 0, %s50
      %s51 = sphi 0, %s48
      %s52 = sphi 0, %s51
      %s68 = sphi 0, %s52
      %s76 = sphi 0, %s78
      %s79 = sphi 0, %s76
      %s80 = sphi 0, %s79
      %s96 = sphi 0, %s80
      %s102 = sphi 0, %s104
      %s105 = sphi 0, %s102
      %s106 = sphi 0, %s105
      %s122 = sphi 0, %s106
      %s126 = sphi 0, %s126
      %s128 = sphi 0, %s126
      %s129 = sphi 0, %s128
      %s143 = sphi 0, %s129
      %s147 = sphi 0, %s147
      %s149 = sphi 0, %s147
      %s150 = sphi 0, %s149
      %s164 = sphi 0, %s150
      %s168 = sphi 0, %s168
      %s170 = sphi 0, %s168
      %s171 = sphi 0, %s170
      %s185 = sphi 0, %s171
      %s189 = sphi 0, %s189
      %s191 = sphi 0, %s189
      %s192 = sphi 0, %s191
      %s206 = sphi 0, %s192
      %s210 = sphi 0, %s210
      %s212 = sphi 0, %s210
      %s213 = sphi 0, %s212
      %s227 = sphi 0, %s213
      %s231 = sphi 0, %s231
      %s233 = sphi 0, %s231
      %s234 = sphi 0, %s233
      %s248 = sphi 0, %s234
      %s252 = sphi 0, %s252
      %s254 = sphi 0, %s252
      %s255 = sphi 0, %s254
      %s269 = sphi 0, %s255
      %s273 = sphi 0, %s273
      %s275 = sphi 0, %s273
      %s276 = sphi 0, %s275
      %s290 = sphi 0, %s276
      %s294 = sphi 0, %s294
      %s296 = sphi 0, %s294
      %s297 = sphi 0, %s296
      %s311 = sphi 0, %s297
      %s315 = sphi 0, %s315
      %s317 = sphi 0, %s315
      %s318 = sphi 0, %s317
      %s332 = sphi 0, %s318
      %s336 = sphi 0, %s336
      %s338 = sphi 0, %s336
      %s339 = sphi 0, %s338
      %s353 = sphi 0, %s339
      %s357 = sphi 0, %s357
      %s359 = sphi 0, %s357
      %s360 = sphi 0, %s359
      %s374 = sphi 0, %s360
      %s378 = sphi 0, %s378
      %s380 = sphi 0, %s378
      %s381 = sphi 0, %s380
      %s395 = sphi 0, %s381
      %s399 = sphi 0, %s399
      %s401 = sphi 0, %s399
      %s402 = sphi 0, %s401
      %s416 = sphi 0, %s402
      %s424 = sphi 0, %s426
      %s427 = sphi 0, %s424
      %s428 = sphi 0, %s427
      %s444 = sphi 0, %s428
    $region4: #{tpu_custom_call.1} parent=1 // loop_header_branch
      %29 = sbr.rel (%p27) target = $region8
    $region5: #{tpu_custom_call.1} parent=1 // loop_body
      %s31 = ssub.s32 %s26, 1
      %s32 = ssub.s32 %s26, 2
      %s39 = sadd.s32 1, %s34
      %p40 = scmp.ge.s32.totalorder %s39, 1
      %s41 = scalar_select %p40, 0, %s39
      %s42 = sadd.s32 1, %s33
      %s43 = scalar_select %p40, %s42, %s33
      %p44 = scmp.ge.s32.totalorder %s43, 2
      %s45 = scalar_select %p44, 0, %s43
      %s46 = ssub.s32 %s33, %s45
      %p47 = scmp.eq.s32.totalorder %s46, 0
      %s49 = sadd.s32 %s48, 1
      %s50 = scalar_select %p47, %s48, %s49
      %p53 = pneg %p47
      %p54 = scmp.eq.s32.totalorder %s26, 1
      %p55 = por %p53, %p54
      %p56 = scmp.ne.s32.totalorder %s48, %s51
      %p57 = scmp.eq.s32.totalorder %s26, 0
      %p58 = por %p56, %p57
      %p59 = scmp.ne.s32.totalorder %s48, %s51
      %p60 = scmp.eq.s32.totalorder %s31, 1
      %p61 = por %p59, %p60
      %p62 = scmp.ne.s32.totalorder %s51, %s52
      %p63 = scmp.eq.s32.totalorder %s31, 0
      %p64 = por %p62, %p63
      %p65 = scmp.ne.s32.totalorder %s51, %s52
      %p66 = scmp.eq.s32.totalorder %s32, 1
      %p67 = por %p65, %p66
      %p69 = scmp.ne.s32.totalorder %s52, %s68
      %p70 = scmp.eq.s32.totalorder %s32, 0
      %p71 = por %p69, %p70
      %s72 = ssub.s32 %s33, %s45
      %s73 = ssub.s32 %s34, %s41
      %s74 = sor.u32 %s72, %s73
      %p75 = scmp.eq.s32.totalorder %s74, 0
      %s77 = sadd.s32 %s76, 1
      %s78 = scalar_select %p75, %s76, %s77
      %p81 = pneg %p75
      %p82 = scmp.eq.s32.totalorder %s26, 1
      %p83 = por %p81, %p82
      %p84 = scmp.ne.s32.totalorder %s76, %s79
      %p85 = scmp.eq.s32.totalorder %s26, 0
      %p86 = por %p84, %p85
      %p87 = scmp.ne.s32.totalorder %s76, %s79
      %p88 = scmp.eq.s32.totalorder %s31, 1
      %p89 = por %p87, %p88
      %p90 = scmp.ne.s32.totalorder %s79, %s80
      %p91 = scmp.eq.s32.totalorder %s31, 0
      %p92 = por %p90, %p91
      %p93 = scmp.ne.s32.totalorder %s79, %s80
      %p94 = scmp.eq.s32.totalorder %s32, 1
      %p95 = por %p93, %p94
      %p97 = scmp.ne.s32.totalorder %s80, %s96
      %p98 = scmp.eq.s32.totalorder %s32, 0
      %p99 = por %p97, %p98
      %s100 = ssub.s32 %s33, %s45
      %p101 = scmp.eq.s32.totalorder %s100, 0
      %s103 = sadd.s32 %s102, 1
      %s104 = scalar_select %p101, %s102, %s103
      %p107 = pneg %p101
      %p108 = scmp.eq.s32.totalorder %s26, 1
      %p109 = por %p107, %p108
      %p110 = scmp.ne.s32.totalorder %s102, %s105
      %p111 = scmp.eq.s32.totalorder %s26, 0
      %p112 = por %p110, %p111
      %p113 = scmp.ne.s32.totalorder %s102, %s105
      %p114 = scmp.eq.s32.totalorder %s31, 1
      %p115 = por %p113, %p114
      %p116 = scmp.ne.s32.totalorder %s105, %s106
      %p117 = scmp.eq.s32.totalorder %s31, 0
      %p118 = por %p116, %p117
      %p119 = scmp.ne.s32.totalorder %s105, %s106
      %p120 = scmp.eq.s32.totalorder %s32, 1
      %p121 = por %p119, %p120
      %p123 = scmp.ne.s32.totalorder %s106, %s122
      %p124 = scmp.eq.s32.totalorder %s32, 0
      %p125 = por %p123, %p124
      %s127 = sadd.s32 %s126, 1
      %p130 = scmp.eq.s32.totalorder %s26, 1
      %p131 = scmp.ne.s32.totalorder %s126, %s128
      %p132 = scmp.eq.s32.totalorder %s26, 0
      %p133 = por %p131, %p132
      %p134 = scmp.ne.s32.totalorder %s126, %s128
      %p135 = scmp.eq.s32.totalorder %s31, 1
      %p136 = por %p134, %p135
      %p137 = scmp.ne.s32.totalorder %s128, %s129
      %p138 = scmp.eq.s32.totalorder %s31, 0
      %p139 = por %p137, %p138
      %p140 = scmp.ne.s32.totalorder %s128, %s129
      %p141 = scmp.eq.s32.totalorder %s32, 1
      %p142 = por %p140, %p141
      %p144 = scmp.ne.s32.totalorder %s129, %s143
      %p145 = scmp.eq.s32.totalorder %s32, 0
      %p146 = por %p144, %p145
      %s148 = sadd.s32 %s147, 1
      %p151 = scmp.eq.s32.totalorder %s26, 1
      %p152 = scmp.ne.s32.totalorder %s147, %s149
      %p153 = scmp.eq.s32.totalorder %s26, 0
      %p154 = por %p152, %p153
      %p155 = scmp.ne.s32.totalorder %s147, %s149
      %p156 = scmp.eq.s32.totalorder %s31, 1
      %p157 = por %p155, %p156
      %p158 = scmp.ne.s32.totalorder %s149, %s150
      %p159 = scmp.eq.s32.totalorder %s31, 0
      %p160 = por %p158, %p159
      %p161 = scmp.ne.s32.totalorder %s149, %s150
      %p162 = scmp.eq.s32.totalorder %s32, 1
      %p163 = por %p161, %p162
      %p165 = scmp.ne.s32.totalorder %s150, %s164
      %p166 = scmp.eq.s32.totalorder %s32, 0
      %p167 = por %p165, %p166
      %s169 = sadd.s32 %s168, 1
      %p172 = scmp.eq.s32.totalorder %s26, 1
      %p173 = scmp.ne.s32.totalorder %s168, %s170
      %p174 = scmp.eq.s32.totalorder %s26, 0
      %p175 = por %p173, %p174
      %p176 = scmp.ne.s32.totalorder %s168, %s170
      %p177 = scmp.eq.s32.totalorder %s31, 1
      %p178 = por %p176, %p177
      %p179 = scmp.ne.s32.totalorder %s170, %s171
      %p180 = scmp.eq.s32.totalorder %s31, 0
      %p181 = por %p179, %p180
      %p182 = scmp.ne.s32.totalorder %s170, %s171
      %p183 = scmp.eq.s32.totalorder %s32, 1
      %p184 = por %p182, %p183
      %p186 = scmp.ne.s32.totalorder %s171, %s185
      %p187 = scmp.eq.s32.totalorder %s32, 0
      %p188 = por %p186, %p187
      %s190 = sadd.s32 %s189, 1
      %p193 = scmp.eq.s32.totalorder %s26, 1
      %p194 = scmp.ne.s32.totalorder %s189, %s191
      %p195 = scmp.eq.s32.totalorder %s26, 0
      %p196 = por %p194, %p195
      %p197 = scmp.ne.s32.totalorder %s189, %s191
      %p198 = scmp.eq.s32.totalorder %s31, 1
      %p199 = por %p197, %p198
      %p200 = scmp.ne.s32.totalorder %s191, %s192
      %p201 = scmp.eq.s32.totalorder %s31, 0
      %p202 = por %p200, %p201
      %p203 = scmp.ne.s32.totalorder %s191, %s192
      %p204 = scmp.eq.s32.totalorder %s32, 1
      %p205 = por %p203, %p204
      %p207 = scmp.ne.s32.totalorder %s192, %s206
      %p208 = scmp.eq.s32.totalorder %s32, 0
      %p209 = por %p207, %p208
      %s211 = sadd.s32 %s210, 1
      %p214 = scmp.eq.s32.totalorder %s26, 1
      %p215 = scmp.ne.s32.totalorder %s210, %s212
      %p216 = scmp.eq.s32.totalorder %s26, 0
      %p217 = por %p215, %p216
      %p218 = scmp.ne.s32.totalorder %s210, %s212
      %p219 = scmp.eq.s32.totalorder %s31, 1
      %p220 = por %p218, %p219
      %p221 = scmp.ne.s32.totalorder %s212, %s213
      %p222 = scmp.eq.s32.totalorder %s31, 0
      %p223 = por %p221, %p222
      %p224 = scmp.ne.s32.totalorder %s212, %s213
      %p225 = scmp.eq.s32.totalorder %s32, 1
      %p226 = por %p224, %p225
      %p228 = scmp.ne.s32.totalorder %s213, %s227
      %p229 = scmp.eq.s32.totalorder %s32, 0
      %p230 = por %p228, %p229
      %s232 = sadd.s32 %s231, 1
      %p235 = scmp.eq.s32.totalorder %s26, 1
      %p236 = scmp.ne.s32.totalorder %s231, %s233
      %p237 = scmp.eq.s32.totalorder %s26, 0
      %p238 = por %p236, %p237
      %p239 = scmp.ne.s32.totalorder %s231, %s233
      %p240 = scmp.eq.s32.totalorder %s31, 1
      %p241 = por %p239, %p240
      %p242 = scmp.ne.s32.totalorder %s233, %s234
      %p243 = scmp.eq.s32.totalorder %s31, 0
      %p244 = por %p242, %p243
      %p245 = scmp.ne.s32.totalorder %s233, %s234
      %p246 = scmp.eq.s32.totalorder %s32, 1
      %p247 = por %p245, %p246
      %p249 = scmp.ne.s32.totalorder %s234, %s248
      %p250 = scmp.eq.s32.totalorder %s32, 0
      %p251 = por %p249, %p250
      %s253 = sadd.s32 %s252, 1
      %p256 = scmp.eq.s32.totalorder %s26, 1
      %p257 = scmp.ne.s32.totalorder %s252, %s254
      %p258 = scmp.eq.s32.totalorder %s26, 0
      %p259 = por %p257, %p258
      %p260 = scmp.ne.s32.totalorder %s252, %s254
      %p261 = scmp.eq.s32.totalorder %s31, 1
      %p262 = por %p260, %p261
      %p263 = scmp.ne.s32.totalorder %s254, %s255
      %p264 = scmp.eq.s32.totalorder %s31, 0
      %p265 = por %p263, %p264
      %p266 = scmp.ne.s32.totalorder %s254, %s255
      %p267 = scmp.eq.s32.totalorder %s32, 1
      %p268 = por %p266, %p267
      %p270 = scmp.ne.s32.totalorder %s255, %s269
      %p271 = scmp.eq.s32.totalorder %s32, 0
      %p272 = por %p270, %p271
      %s274 = sadd.s32 %s273, 1
      %p277 = scmp.eq.s32.totalorder %s26, 1
      %p278 = scmp.ne.s32.totalorder %s273, %s275
      %p279 = scmp.eq.s32.totalorder %s26, 0
      %p280 = por %p278, %p279
      %p281 = scmp.ne.s32.totalorder %s273, %s275
      %p282 = scmp.eq.s32.totalorder %s31, 1
      %p283 = por %p281, %p282
      %p284 = scmp.ne.s32.totalorder %s275, %s276
      %p285 = scmp.eq.s32.totalorder %s31, 0
      %p286 = por %p284, %p285
      %p287 = scmp.ne.s32.totalorder %s275, %s276
      %p288 = scmp.eq.s32.totalorder %s32, 1
      %p289 = por %p287, %p288
      %p291 = scmp.ne.s32.totalorder %s276, %s290
      %p292 = scmp.eq.s32.totalorder %s32, 0
      %p293 = por %p291, %p292
      %s295 = sadd.s32 %s294, 1
      %p298 = scmp.eq.s32.totalorder %s26, 1
      %p299 = scmp.ne.s32.totalorder %s294, %s296
      %p300 = scmp.eq.s32.totalorder %s26, 0
      %p301 = por %p299, %p300
      %p302 = scmp.ne.s32.totalorder %s294, %s296
      %p303 = scmp.eq.s32.totalorder %s31, 1
      %p304 = por %p302, %p303
      %p305 = scmp.ne.s32.totalorder %s296, %s297
      %p306 = scmp.eq.s32.totalorder %s31, 0
      %p307 = por %p305, %p306
      %p308 = scmp.ne.s32.totalorder %s296, %s297
      %p309 = scmp.eq.s32.totalorder %s32, 1
      %p310 = por %p308, %p309
      %p312 = scmp.ne.s32.totalorder %s297, %s311
      %p313 = scmp.eq.s32.totalorder %s32, 0
      %p314 = por %p312, %p313
      %s316 = sadd.s32 %s315, 1
      %p319 = scmp.eq.s32.totalorder %s26, 1
      %p320 = scmp.ne.s32.totalorder %s315, %s317
      %p321 = scmp.eq.s32.totalorder %s26, 0
      %p322 = por %p320, %p321
      %p323 = scmp.ne.s32.totalorder %s315, %s317
      %p324 = scmp.eq.s32.totalorder %s31, 1
      %p325 = por %p323, %p324
      %p326 = scmp.ne.s32.totalorder %s317, %s318
      %p327 = scmp.eq.s32.totalorder %s31, 0
      %p328 = por %p326, %p327
      %p329 = scmp.ne.s32.totalorder %s317, %s318
      %p330 = scmp.eq.s32.totalorder %s32, 1
      %p331 = por %p329, %p330
      %p333 = scmp.ne.s32.totalorder %s318, %s332
      %p334 = scmp.eq.s32.totalorder %s32, 0
      %p335 = por %p333, %p334
      %s337 = sadd.s32 %s336, 1
      %p340 = scmp.eq.s32.totalorder %s26, 1
      %p341 = scmp.ne.s32.totalorder %s336, %s338
      %p342 = scmp.eq.s32.totalorder %s26, 0
      %p343 = por %p341, %p342
      %p344 = scmp.ne.s32.totalorder %s336, %s338
      %p345 = scmp.eq.s32.totalorder %s31, 1
      %p346 = por %p344, %p345
      %p347 = scmp.ne.s32.totalorder %s338, %s339
      %p348 = scmp.eq.s32.totalorder %s31, 0
      %p349 = por %p347, %p348
      %p350 = scmp.ne.s32.totalorder %s338, %s339
      %p351 = scmp.eq.s32.totalorder %s32, 1
      %p352 = por %p350, %p351
      %p354 = scmp.ne.s32.totalorder %s339, %s353
      %p355 = scmp.eq.s32.totalorder %s32, 0
      %p356 = por %p354, %p355
      %s358 = sadd.s32 %s357, 1
      %p361 = scmp.eq.s32.totalorder %s26, 1
      %p362 = scmp.ne.s32.totalorder %s357, %s359
      %p363 = scmp.eq.s32.totalorder %s26, 0
      %p364 = por %p362, %p363
      %p365 = scmp.ne.s32.totalorder %s357, %s359
      %p366 = scmp.eq.s32.totalorder %s31, 1
      %p367 = por %p365, %p366
      %p368 = scmp.ne.s32.totalorder %s359, %s360
      %p369 = scmp.eq.s32.totalorder %s31, 0
      %p370 = por %p368, %p369
      %p371 = scmp.ne.s32.totalorder %s359, %s360
      %p372 = scmp.eq.s32.totalorder %s32, 1
      %p373 = por %p371, %p372
      %p375 = scmp.ne.s32.totalorder %s360, %s374
      %p376 = scmp.eq.s32.totalorder %s32, 0
      %p377 = por %p375, %p376
      %s379 = sadd.s32 %s378, 1
      %p382 = scmp.eq.s32.totalorder %s26, 1
      %p383 = scmp.ne.s32.totalorder %s378, %s380
      %p384 = scmp.eq.s32.totalorder %s26, 0
      %p385 = por %p383, %p384
      %p386 = scmp.ne.s32.totalorder %s378, %s380
      %p387 = scmp.eq.s32.totalorder %s31, 1
      %p388 = por %p386, %p387
      %p389 = scmp.ne.s32.totalorder %s380, %s381
      %p390 = scmp.eq.s32.totalorder %s31, 0
      %p391 = por %p389, %p390
      %p392 = scmp.ne.s32.totalorder %s380, %s381
      %p393 = scmp.eq.s32.totalorder %s32, 1
      %p394 = por %p392, %p393
      %p396 = scmp.ne.s32.totalorder %s381, %s395
      %p397 = scmp.eq.s32.totalorder %s32, 0
      %p398 = por %p396, %p397
      %s400 = sadd.s32 %s399, 1
      %p403 = scmp.eq.s32.totalorder %s26, 1
      %p404 = scmp.ne.s32.totalorder %s399, %s401
      %p405 = scmp.eq.s32.totalorder %s26, 0
      %p406 = por %p404, %p405
      %p407 = scmp.ne.s32.totalorder %s399, %s401
      %p408 = scmp.eq.s32.totalorder %s31, 1
      %p409 = por %p407, %p408
      %p410 = scmp.ne.s32.totalorder %s401, %s402
      %p411 = scmp.eq.s32.totalorder %s31, 0
      %p412 = por %p410, %p411
      %p413 = scmp.ne.s32.totalorder %s401, %s402
      %p414 = scmp.eq.s32.totalorder %s32, 1
      %p415 = por %p413, %p414
      %p417 = scmp.ne.s32.totalorder %s402, %s416
      %p418 = scmp.eq.s32.totalorder %s32, 0
      %p419 = por %p417, %p418
      %s420 = ssub.s32 %s33, %s45
      %s421 = ssub.s32 %s34, %s41
      %s422 = sor.u32 %s420, %s421
      %p423 = scmp.eq.s32.totalorder %s422, 0
      %s425 = sadd.s32 %s424, 1
      %s426 = scalar_select %p423, %s424, %s425
      %p429 = pneg %p423
      %p430 = scmp.eq.s32.totalorder %s26, 1
      %p431 = por %p429, %p430
      %p432 = scmp.ne.s32.totalorder %s424, %s427
      %p433 = scmp.eq.s32.totalorder %s26, 0
      %p434 = por %p432, %p433
      %p435 = scmp.ne.s32.totalorder %s424, %s427
      %p436 = scmp.eq.s32.totalorder %s31, 1
      %p437 = por %p435, %p436
      %p438 = scmp.ne.s32.totalorder %s427, %s428
      %p439 = scmp.eq.s32.totalorder %s31, 0
      %p440 = por %p438, %p439
      %p441 = scmp.ne.s32.totalorder %s427, %s428
      %p442 = scmp.eq.s32.totalorder %s32, 1
      %p443 = por %p441, %p442
      %p445 = scmp.ne.s32.totalorder %s428, %s444
      %p446 = scmp.eq.s32.totalorder %s32, 0
      %p447 = por %p445, %p446
      %p448 = scmp.le.s32.totalorder 1, %s26
      %p449 = scmp.lt.s32.totalorder %s26, 3
      %p450 = pnand %p448, %p449
      %p451 = pneg %p450
      // Predicated region
      $region9: #{tpu_custom_call.1} parent=5 // pred_check
        _
      $region10: #{tpu_custom_call.1} parent=5 // pred_check_branch
        %453 = sbr.rel (%p450) target = $region12
      $region11: #{tpu_custom_call.1} parent=5 // pred_region
        %s454 = ssub.s32 %s26, 1
        // Predicated region
        $region13: #{tpu_custom_call.1} parent=11 // pred_check
          %p455 = pneg %p139
        $region14: #{tpu_custom_call.1} parent=11 // pred_check_branch
          %457 = sbr.rel (%p455) target = $region16
        $region15: #{tpu_custom_call.1} parent=11 // pred_region
          _
        $region16: #{tpu_custom_call.1} parent=11 // pred_fallthru
          _
        // Predicated region
        $region17: #{tpu_custom_call.1} parent=11 // pred_check
          %p458 = pneg %p160
        $region18: #{tpu_custom_call.1} parent=11 // pred_check_branch
          %460 = sbr.rel (%p458) target = $region20
        $region19: #{tpu_custom_call.1} parent=11 // pred_region
          _
        $region20: #{tpu_custom_call.1} parent=11 // pred_fallthru
          _
        // Predicated region
        $region21: #{tpu_custom_call.1} parent=11 // pred_check
          %p461 = pneg %p181
        $region22: #{tpu_custom_call.1} parent=11 // pred_check_branch
          %463 = sbr.rel (%p461) target = $region24
        $region23: #{tpu_custom_call.1} parent=11 // pred_region
          _
        $region24: #{tpu_custom_call.1} parent=11 // pred_fallthru
          _
        // Predicated region
        $region25: #{tpu_custom_call.1} parent=11 // pred_check
          %p464 = pneg %p202
        $region26: #{tpu_custom_call.1} parent=11 // pred_check_branch
          %466 = sbr.rel (%p464) target = $region28
        $region27: #{tpu_custom_call.1} parent=11 // pred_region
          _
        $region28: #{tpu_custom_call.1} parent=11 // pred_fallthru
          _
        // Predicated region
        $region29: #{tpu_custom_call.1} parent=11 // pred_check
          %p467 = pneg %p223
        $region30: #{tpu_custom_call.1} parent=11 // pred_check_branch
          %469 = sbr.rel (%p467) target = $region32
        $region31: #{tpu_custom_call.1} parent=11 // pred_region
          _
        $region32: #{tpu_custom_call.1} parent=11 // pred_fallthru
          _
        // Predicated region
        $region33: #{tpu_custom_call.1} parent=11 // pred_check
          %p470 = pneg %p244
        $region34: #{tpu_custom_call.1} parent=11 // pred_check_branch
          %472 = sbr.rel (%p470) target = $region36
        $region35: #{tpu_custom_call.1} parent=11 // pred_region
          _
        $region36: #{tpu_custom_call.1} parent=11 // pred_fallthru
          _
        // Predicated region
        $region37: #{tpu_custom_call.1} parent=11 // pred_check
          %p473 = pneg %p265
        $region38: #{tpu_custom_call.1} parent=11 // pred_check_branch
          %475 = sbr.rel (%p473) target = $region40
        $region39: #{tpu_custom_call.1} parent=11 // pred_region
          _
        $region40: #{tpu_custom_call.1} parent=11 // pred_fallthru
          _
        // Predicated region
        $region41: #{tpu_custom_call.1} parent=11 // pred_check
          %p476 = pneg %p286
        $region42: #{tpu_custom_call.1} parent=11 // pred_check_branch
          %478 = sbr.rel (%p476) target = $region44
        $region43: #{tpu_custom_call.1} parent=11 // pred_region
          _
        $region44: #{tpu_custom_call.1} parent=11 // pred_fallthru
          _
        // Predicated region
        $region45: #{tpu_custom_call.1} parent=11 // pred_check
          %p479 = pneg %p307
        $region46: #{tpu_custom_call.1} parent=11 // pred_check_branch
          %481 = sbr.rel (%p479) target = $region48
        $region47: #{tpu_custom_call.1} parent=11 // pred_region
          _
        $region48: #{tpu_custom_call.1} parent=11 // pred_fallthru
          _
        // Predicated region
        $region49: #{tpu_custom_call.1} parent=11 // pred_check
          %p482 = pneg %p328
        $region50: #{tpu_custom_call.1} parent=11 // pred_check_branch
          %484 = sbr.rel (%p482) target = $region52
        $region51: #{tpu_custom_call.1} parent=11 // pred_region
          _
        $region52: #{tpu_custom_call.1} parent=11 // pred_fallthru
          _
        // Predicated region
        $region53: #{tpu_custom_call.1} parent=11 // pred_check
          %p485 = pneg %p349
        $region54: #{tpu_custom_call.1} parent=11 // pred_check_branch
          %487 = sbr.rel (%p485) target = $region56
        $region55: #{tpu_custom_call.1} parent=11 // pred_region
          _
        $region56: #{tpu_custom_call.1} parent=11 // pred_fallthru
          _
        // Predicated region
        $region57: #{tpu_custom_call.1} parent=11 // pred_check
          %p488 = pneg %p370
        $region58: #{tpu_custom_call.1} parent=11 // pred_check_branch
          %490 = sbr.rel (%p488) target = $region60
        $region59: #{tpu_custom_call.1} parent=11 // pred_region
          _
        $region60: #{tpu_custom_call.1} parent=11 // pred_fallthru
          _
        // Predicated region
        $region61: #{tpu_custom_call.1} parent=11 // pred_check
          %p491 = pneg %p391
        $region62: #{tpu_custom_call.1} parent=11 // pred_check_branch
          %493 = sbr.rel (%p491) target = $region64
        $region63: #{tpu_custom_call.1} parent=11 // pred_region
          _
        $region64: #{tpu_custom_call.1} parent=11 // pred_fallthru
          _
        // Predicated region
        $region65: #{tpu_custom_call.1} parent=11 // pred_check
          %p494 = pneg %p412
        $region66: #{tpu_custom_call.1} parent=11 // pred_check_branch
          %496 = sbr.rel (%p494) target = $region68
        $region67: #{tpu_custom_call.1} parent=11 // pred_region
          _
        $region68: #{tpu_custom_call.1} parent=11 // pred_fallthru
          _
      $region12: #{tpu_custom_call.1} parent=5 // pred_fallthru
        _
      %p497 = scmp.lt.s32.totalorder %s26, 2
      // Predicated region
      $region69: #{tpu_custom_call.1} parent=5 // pred_check
        %p498 = pneg %p497
      $region70: #{tpu_custom_call.1} parent=5 // pred_check_branch
        %500 = sbr.rel (%p498) target = $region72
      $region71: #{tpu_custom_call.1} parent=5 // pred_region
        // Predicated region
        $region73: #{tpu_custom_call.1} parent=71 // pred_check
          %p501 = pneg %p58
        $region74: #{tpu_custom_call.1} parent=71 // pred_check_branch
          %503 = sbr.rel (%p501) target = $region76
        $region75: #{tpu_custom_call.1} parent=71 // pred_region
          %p504 = scmp.lt.s32.totalorder %s33, 1
          %s505 = scalar_select %p504, %s33, 1
          %s506 = scalar_lea.vmem %s0, %s505
        $region76: #{tpu_custom_call.1} parent=71 // pred_fallthru
          _
        // Predicated region
        $region77: #{tpu_custom_call.1} parent=71 // pred_check
          %p507 = pneg %p86
        $region78: #{tpu_custom_call.1} parent=71 // pred_check_branch
          %509 = sbr.rel (%p507) target = $region80
        $region79: #{tpu_custom_call.1} parent=71 // pred_region
          %p510 = scmp.lt.s32.totalorder %s33, 1
          %s511 = scalar_select %p510, %s33, 1
          %p512 = scmp.lt.s32.totalorder %s34, 0
          %s513 = scalar_select %p512, %s34, 0
          %s514 = sadd.s32 %s513, %s511
          %s515 = smul.addr %s514, 8
          %s516 = scalar_lea.vmem %s1, %s515
        $region80: #{tpu_custom_call.1} parent=71 // pred_fallthru
          _
        // Predicated region
        $region81: #{tpu_custom_call.1} parent=71 // pred_check
          %p517 = pneg %p112
        $region82: #{tpu_custom_call.1} parent=71 // pred_check_branch
          %519 = sbr.rel (%p517) target = $region84
        $region83: #{tpu_custom_call.1} parent=71 // pred_region
          %p520 = scmp.lt.s32.totalorder %s33, 1
          %s521 = scalar_select %p520, %s33, 1
          %s522 = smul.addr %s521, 16
          %s523 = smul.addr %s522, 4
          %s524 = scalar_lea.vmem %s2, %s523
        $region84: #{tpu_custom_call.1} parent=71 // pred_fallthru
          _
      $region72: #{tpu_custom_call.1} parent=5 // pred_fallthru
        _
      %p525 = scmp.le.s32.totalorder 1, %s26
      %p526 = scmp.lt.s32.totalorder %s26, 3
      %p527 = pnand %p525, %p526
      %p528 = pneg %p527
      // Predicated region
      $region85: #{tpu_custom_call.1} parent=5 // pred_check
        _
      $region86: #{tpu_custom_call.1} parent=5 // pred_check_branch
        %530 = sbr.rel (%p527) target = $region88
      $region87: #{tpu_custom_call.1} parent=5 // pred_region
        %s531 = ssub.s32 %s26, 1
        %p532 = scmp.lt.s32.totalorder %s35, 1
        %s533 = scalar_select %p532, %s35, 1
        %s534 = scalar_lea.vmem %s0, %s533
        %p535 = pneg %p64
        %p536 = pneg %p61
        %p537 = scmp.lt.s32.totalorder %s35, 1
        %s538 = scalar_select %p537, %s35, 1
        %p539 = scmp.lt.s32.totalorder %s36, 0
        %s540 = scalar_select %p539, %s36, 0
        %s541 = sadd.s32 %s540, %s538
        %s542 = smul.addr %s541, 8
        %s543 = scalar_lea.vmem %s1, %s542
        %p544 = pneg %p92
        %p545 = pneg %p89
        %p546 = scmp.lt.s32.totalorder %s35, 1
        %s547 = scalar_select %p546, %s35, 1
        %s548 = smul.addr %s547, 16
        %s549 = smul.addr %s548, 4
        %s550 = scalar_lea.vmem %s2, %s549
        %p551 = pneg %p118
        %p552 = pneg %p115
        %p553 = pneg %p139
        %p554 = pneg %p136
        %p555 = pneg %p160
        %p556 = pneg %p157
        %p557 = pneg %p181
        %p558 = pneg %p178
        %p559 = pneg %p202
        %p560 = pneg %p199
        %p561 = pneg %p223
        %p562 = pneg %p220
        %p563 = pneg %p244
        %p564 = pneg %p241
        %p565 = pneg %p265
        %p566 = pneg %p262
        %p567 = pneg %p286
        %p568 = pneg %p283
        %p569 = pneg %p307
        %p570 = pneg %p304
        %p571 = pneg %p328
        %p572 = pneg %p325
        %p573 = pneg %p349
        %p574 = pneg %p346
        %p575 = pneg %p370
        %p576 = pneg %p367
        %p577 = pneg %p391
        %p578 = pneg %p388
        %p579 = pneg %p412
        %p580 = pneg %p409
        %p581 = pneg %p440
        %p582 = pneg %p437
        %s583 = sand.u32 %s427, 1
        %s584 = scalar_lea.sflag [#allocation5], %s583
        %s585 = sand.u32 %s427, 1
        %s586 = smul.addr %s585, 8
        %s587 = scalar_lea.vmem [#allocation4], %s586
        %p588 = scmp.lt.s32.totalorder %s35, 1
        %s589 = scalar_select %p588, %s35, 1
        %s590 = scalar_lea.vmem %s0, %s589
        %p591 = scmp.lt.s32.totalorder %s35, 1
        %s592 = scalar_select %p591, %s35, 1
        %p593 = scmp.lt.s32.totalorder %s36, 0
        %s594 = scalar_select %p593, %s36, 0
        %s595 = sadd.s32 %s594, %s592
        %s596 = smul.addr %s595, 8
        %s597 = scalar_lea.vmem %s1, %s596
        %p598 = scmp.lt.s32.totalorder %s35, 1
        %s599 = scalar_select %p598, %s35, 1
        %s600 = smul.addr %s599, 16
        %s601 = smul.addr %s600, 4
        %s602 = scalar_lea.vmem %s2, %s601
        %p604 = scmp.eq.s32.totalorder %s36, 0
        // Predicated region
        $region89: #{tpu_custom_call.1} parent=87 // pred_check
          %p605 = pneg %p604
        $region90: #{tpu_custom_call.1} parent=87 // pred_check_branch
          %607 = sbr.rel (%p605) target = $region92
        $region91: #{tpu_custom_call.1} parent=87 // pred_region
          %v608 = vld [vmem:[%s602] sm:$0xf]
          %v609 = vld [vmem:[%s602 + $0x4] sm:$0xf]
          %v610 = vld [vmem:[%s602 + $0x8] sm:$0xf]
          %v611 = vld [vmem:[%s602 + $0xc] sm:$0xf]
          %v612 = vld [vmem:[%s602 + $0x10] sm:$0xf]
          %v613 = vld [vmem:[%s602 + $0x14] sm:$0xf]
          %v614 = vld [vmem:[%s602 + $0x18] sm:$0xf]
          %v615 = vld [vmem:[%s602 + $0x1c] sm:$0xf]
          %v616 = vld [vmem:[%s602 + $0x20] sm:$0xf]
          %v617 = vld [vmem:[%s602 + $0x24] sm:$0xf]
          %v618 = vld [vmem:[%s602 + $0x28] sm:$0xf]
          %v619 = vld [vmem:[%s602 + $0x2c] sm:$0xf]
          %v620 = vld [vmem:[%s602 + $0x30] sm:$0xf]
          %v621 = vld [vmem:[%s602 + $0x34] sm:$0xf]
          %v622 = vld [vmem:[%s602 + $0x38] sm:$0xf]
          %v623 = vld [vmem:[%s602 + $0x3c] sm:$0xf]
          %v624 = vld [vmem:[%s5] sm:$0xf]
          %v625 = vld [vmem:[%s5 + $0x4] sm:$0xf]
          %v626 = vld [vmem:[%s5 + $0x8] sm:$0xf]
          %v627 = vld [vmem:[%s5 + $0xc] sm:$0xf]
          %v628 = vld [vmem:[%s6] sm:$0xff]
          %v629 = vld [vmem:[%s6 + $0x8] sm:$0xff]
          %v630 = vld [vmem:[%s6 + $0x10] sm:$0xff]
          %v631 = vld [vmem:[%s6 + $0x18] sm:$0xff]
          %633 = vset.pattern.permute.xlu0 0
          %634 = vperm.xlu0 %633, %v628
          %v635 = vpop.permute.xlu0 %634
          %638 = vset.pattern.permute.xlu0 0
          %639 = vperm.xlu0 %638, %v629
          %v640 = vpop.permute.xlu0 %639
          %643 = vset.pattern.permute.xlu0 0
          %644 = vperm.xlu0 %643, %v630
          %v645 = vpop.permute.xlu0 %644
          %648 = vset.pattern.permute.xlu0 0
          %649 = vperm.xlu0 %648, %v631
          %v650 = vpop.permute.xlu0 %649
          %v656 = vunpack.c.l.b16 %v624
          %v657 = vunpack.c.l.b16 %v625
          %v658 = vunpack.c.l.b16 %v626
          %v659 = vunpack.c.l.b16 %v627
          %v660 = vpack.c.b16 %v657, %v656
          %v661 = vpack.c.b16 %v659, %v658
          %v680 = vunpack.c.l.b16 %v608
          %v681 = vunpack.c.l.b16 %v609
          %v682 = vunpack.c.l.b16 %v610
          %v683 = vunpack.c.l.b16 %v611
          %v684 = vunpack.c.l.b16 %v612
          %v685 = vunpack.c.l.b16 %v613
          %v686 = vunpack.c.l.b16 %v614
          %v687 = vunpack.c.l.b16 %v615
          %v688 = vunpack.c.l.b16 %v616
          %v689 = vunpack.c.l.b16 %v617
          %v690 = vunpack.c.l.b16 %v618
          %v691 = vunpack.c.l.b16 %v619
          %v692 = vunpack.c.l.b16 %v620
          %v693 = vunpack.c.l.b16 %v621
          %v694 = vunpack.c.l.b16 %v622
          %v695 = vunpack.c.l.b16 %v623
          %v696 = vpack.c.b16 %v681, %v680
          %v697 = vpack.c.b16 %v683, %v682
          %v698 = vpack.c.b16 %v685, %v684
          %v699 = vpack.c.b16 %v687, %v686
          %v700 = vpack.c.b16 %v689, %v688
          %v701 = vpack.c.b16 %v691, %v690
          %v702 = vpack.c.b16 %v693, %v692
          %v703 = vpack.c.b16 %v695, %v694
          %712 = vmatprep.subr.bf16.mxu0 0
          %713 = vmatpush1.bf16.msra.mxu0 %v696
          %714 = vmatprep.subr.bf16.mxu0 0
          %715 = vmatpush1.bf16.msra.mxu0 %v697
          %716 = vmatprep.subr.bf16.mxu0 0
          %717 = vmatpush1.bf16.msra.mxu0 %v698
          %718 = vmatprep.subr.bf16.mxu0 0
          %719 = vmatpush1.bf16.msra.mxu0 %v699
          %720 = vmatprep.subr.bf16.mxu0 0
          %721 = vmatpush1.bf16.msra.mxu0 %v700
          %722 = vmatprep.subr.bf16.mxu0 0
          %723 = vmatpush1.bf16.msra.mxu0 %v701
          %724 = vmatprep.subr.bf16.mxu0 0
          %725 = vmatpush1.bf16.msra.mxu0 %v702
          %726 = vmatprep.subr.bf16.mxu0 0
          %727 = vmatpush1.bf16.msra.mxu0 %v703
          %728 = vmatprep.subr.bf16.mxu0 0
          %729 = vmatpush1.bf16.msra.mxu0 0
          %730 = vmatprep.subr.bf16.mxu0 0
          %731 = vmatpush1.bf16.msra.mxu0 0
          %732 = vmatprep.subr.bf16.mxu0 0
          %733 = vmatpush1.bf16.msra.mxu0 0
          %734 = vmatprep.subr.bf16.mxu0 0
          %735 = vmatpush1.bf16.msra.mxu0 0
          %736 = vmatprep.subr.bf16.mxu0 0
          %737 = vmatpush1.bf16.msra.mxu0 0
          %738 = vmatprep.subr.bf16.mxu0 0
          %739 = vmatpush1.bf16.msra.mxu0 0
          %740 = vmatprep.subr.bf16.mxu0 0
          %741 = vmatpush1.bf16.msra.mxu0 0
          %742 = vmatprep.subr.bf16.mxu0 0
          %743 = vmatpush1.bf16.msra.mxu0 0
          %744 = vmatprep.mubr.bf16.mxu0 0
          %745 = vmatmul.mubr.bf16.gmra.mrb[0].mxu0 %v660
          %v746 = vpop.f32.mrb[0].mxu0
          %v747 = vadd.f32 %v635, %v746
          %v748 = vpop.f32.mrb[0].mxu0
          %v749 = vpop.f32.mrb[0].mxu0
          %v750 = vadd.f32 %v640, %v749
          %v751 = vpop.f32.mrb[0].mxu0
          %752 = vmatprep.mubr.bf16.mxu0 0
          %753 = vmatmul.mubr.bf16.gmra.mrb[0].mxu0 %v661
          %v754 = vpop.f32.mrb[0].mxu0
          %v755 = vadd.f32 %v645, %v754
          %v756 = vpop.f32.mrb[0].mxu0
          %v757 = vpop.f32.mrb[0].mxu0
          %v758 = vadd.f32 %v650, %v757
          %v759 = vpop.f32.mrb[0].mxu0
          %760 = vdwg.mxu0
          %v761 = vld [vmem:[%s7] sm:$0xf]
          %v762 = vld [vmem:[%s7 + $0x4] sm:$0xf]
          %v763 = vld [vmem:[%s7 + $0x8] sm:$0xf]
          %v764 = vld [vmem:[%s7 + $0xc] sm:$0xf]
          %v765 = vld [vmem:[%s8] sm:$0xff]
          %v766 = vld [vmem:[%s8 + $0x8] sm:$0xff]
          %v767 = vld [vmem:[%s8 + $0x10] sm:$0xff]
          %v768 = vld [vmem:[%s8 + $0x18] sm:$0xff]
          %770 = vset.pattern.permute.xlu0 0
          %771 = vperm.xlu0 %770, %v765
          %v772 = vpop.permute.xlu0 %771
          %775 = vset.pattern.permute.xlu0 0
          %776 = vperm.xlu0 %775, %v766
          %v777 = vpop.permute.xlu0 %776
          %780 = vset.pattern.permute.xlu0 0
          %781 = vperm.xlu0 %780, %v767
          %v782 = vpop.permute.xlu0 %781
          %785 = vset.pattern.permute.xlu0 0
          %786 = vperm.xlu0 %785, %v768
          %v787 = vpop.permute.xlu0 %786
          %v793 = vunpack.c.l.b16 %v761
          %v794 = vunpack.c.l.b16 %v762
          %v795 = vunpack.c.l.b16 %v763
          %v796 = vunpack.c.l.b16 %v764
          %v797 = vpack.c.b16 %v794, %v793
          %v798 = vpack.c.b16 %v796, %v795
          %801 = vmatprep.subr.bf16.mxu0 0
          %802 = vmatpush1.bf16.msra.mxu0 %v696
          %803 = vmatprep.subr.bf16.mxu0 0
          %804 = vmatpush1.bf16.msra.mxu0 %v697
          %805 = vmatprep.subr.bf16.mxu0 0
          %806 = vmatpush1.bf16.msra.mxu0 %v698
          %807 = vmatprep.subr.bf16.mxu0 0
          %808 = vmatpush1.bf16.msra.mxu0 %v699
          %809 = vmatprep.subr.bf16.mxu0 0
          %810 = vmatpush1.bf16.msra.mxu0 %v700
          %811 = vmatprep.subr.bf16.mxu0 0
          %812 = vmatpush1.bf16.msra.mxu0 %v701
          %813 = vmatprep.subr.bf16.mxu0 0
          %814 = vmatpush1.bf16.msra.mxu0 %v702
          %815 = vmatprep.subr.bf16.mxu0 0
          %816 = vmatpush1.bf16.msra.mxu0 %v703
          %817 = vmatprep.subr.bf16.mxu0 0
          %818 = vmatpush1.bf16.msra.mxu0 0
          %819 = vmatprep.subr.bf16.mxu0 0
          %820 = vmatpush1.bf16.msra.mxu0 0
          %821 = vmatprep.subr.bf16.mxu0 0
          %822 = vmatpush1.bf16.msra.mxu0 0
          %823 = vmatprep.subr.bf16.mxu0 0
          %824 = vmatpush1.bf16.msra.mxu0 0
          %825 = vmatprep.subr.bf16.mxu0 0
          %826 = vmatpush1.bf16.msra.mxu0 0
          %827 = vmatprep.subr.bf16.mxu0 0
          %828 = vmatpush1.bf16.msra.mxu0 0
          %829 = vmatprep.subr.bf16.mxu0 0
          %830 = vmatpush1.bf16.msra.mxu0 0
          %831 = vmatprep.subr.bf16.mxu0 0
          %832 = vmatpush1.bf16.msra.mxu0 0
          %833 = vmatprep.mubr.bf16.mxu0 0
          %834 = vmatmul.mubr.bf16.gmra.mrb[0].mxu0 %v797
          %v835 = vpop.f32.mrb[0].mxu0
          %v836 = vadd.f32 %v772, %v835
          %v837 = vpop.f32.mrb[0].mxu0
          %v838 = vpop.f32.mrb[0].mxu0
          %v839 = vadd.f32 %v777, %v838
          %v840 = vpop.f32.mrb[0].mxu0
          %841 = vmatprep.mubr.bf16.mxu0 0
          %842 = vmatmul.mubr.bf16.gmra.mrb[0].mxu0 %v798
          %v843 = vpop.f32.mrb[0].mxu0
          %v844 = vadd.f32 %v782, %v843
          %v845 = vpop.f32.mrb[0].mxu0
          %v846 = vpop.f32.mrb[0].mxu0
          %v847 = vadd.f32 %v787, %v846
          %v848 = vpop.f32.mrb[0].mxu0
          %849 = vdwg.mxu0
          %v850 = vpack.c.bf16 %v750, %v747
          %v851 = vpack.c.bf16 %v758, %v755
          %vm852 = vcmask 64512
          %853 = vst.msk [vmem:[#allocation2] sm:$0xff] %vm852, %v850
          %854 = vst.msk [vmem:[#allocation2 + $0x8] sm:$0xff] %vm852, %v851
          %v855 = vpack.c.bf16 %v839, %v836
          %v856 = vpack.c.bf16 %v847, %v844
          %857 = vst.msk [vmem:[#allocation3] sm:$0xff] %vm852, %v855
          %858 = vst.msk [vmem:[#allocation3 + $0x8] sm:$0xff] %vm852, %v856
        $region92: #{tpu_custom_call.1} parent=87 // pred_fallthru
          _
        %v859 = vld [vmem:[%s597] sm:$0xff]
        %v860 = vpack.c.bf16 %v859, %v859
        %v861 = vld [vmem:[%s3] sm:$0xf]
        %v862 = vld [vmem:[%s3 + $0x4] sm:$0xf]
        %v863 = vld [vmem:[%s3 + $0x8] sm:$0xf]
        %v864 = vld [vmem:[%s3 + $0xc] sm:$0xf]
        %v865 = vld [vmem:[%s4] sm:$0xff]
        %v866 = vld [vmem:[%s4 + $0x8] sm:$0xff]
        %v867 = vld [vmem:[%s4 + $0x10] sm:$0xff]
        %v868 = vld [vmem:[%s4 + $0x18] sm:$0xff]
        %870 = vset.pattern.permute.xlu0 0
        %871 = vperm.xlu0 %870, %v865
        %v872 = vpop.permute.xlu0 %871
        %875 = vset.pattern.permute.xlu0 0
        %876 = vperm.xlu0 %875, %v866
        %v877 = vpop.permute.xlu0 %876
        %880 = vset.pattern.permute.xlu0 0
        %881 = vperm.xlu0 %880, %v867
        %v882 = vpop.permute.xlu0 %881
        %885 = vset.pattern.permute.xlu0 0
        %886 = vperm.xlu0 %885, %v868
        %v887 = vpop.permute.xlu0 %886
        %v893 = vunpack.c.l.b16 %v861
        %v894 = vunpack.c.l.b16 %v862
        %v895 = vunpack.c.l.b16 %v863
        %v896 = vunpack.c.l.b16 %v864
        %v897 = vpack.c.b16 %v894, %v893
        %v898 = vpack.c.b16 %v896, %v895
        %901 = vmatprep.subr.bf16.mxu0 0
        %902 = vmatpush1.bf16.xpose.msra.mxu0 %v860
        %903 = vmatprep.subr.bf16.mxu0 0
        %904 = vmatpush1.bf16.xpose.msra.mxu0 0
        %905 = vmatprep.subr.bf16.mxu0 0
        %906 = vmatpush1.bf16.xpose.msra.mxu0 0
        %907 = vmatprep.subr.bf16.mxu0 0
        %908 = vmatpush1.bf16.xpose.msra.mxu0 0
        %909 = vmatprep.subr.bf16.mxu0 0
        %910 = vmatpush1.bf16.xpose.msra.mxu0 0
        %911 = vmatprep.subr.bf16.mxu0 0
        %912 = vmatpush1.bf16.xpose.msra.mxu0 0
        %913 = vmatprep.subr.bf16.mxu0 0
        %914 = vmatpush1.bf16.xpose.msra.mxu0 0
        %915 = vmatprep.subr.bf16.mxu0 0
        %916 = vmatpush1.bf16.xpose.msra.mxu0 0
        %917 = vmatprep.subr.bf16.mxu0 0
        %918 = vmatpush1.bf16.xpose.msra.mxu0 0
        %919 = vmatprep.subr.bf16.mxu0 0
        %920 = vmatpush1.bf16.xpose.msra.mxu0 0
        %921 = vmatprep.subr.bf16.mxu0 0
        %922 = vmatpush1.bf16.xpose.msra.mxu0 0
        %923 = vmatprep.subr.bf16.mxu0 0
        %924 = vmatpush1.bf16.xpose.msra.mxu0 0
        %925 = vmatprep.subr.bf16.mxu0 0
        %926 = vmatpush1.bf16.xpose.msra.mxu0 0
        %927 = vmatprep.subr.bf16.mxu0 0
        %928 = vmatpush1.bf16.xpose.msra.mxu0 0
        %929 = vmatprep.subr.bf16.mxu0 0
        %930 = vmatpush1.bf16.xpose.msra.mxu0 0
        %931 = vmatprep.subr.bf16.mxu0 0
        %932 = vmatpush1.bf16.xpose.msra.mxu0 0
        %933 = vmatprep.mubr.bf16.mxu0 0
        %934 = vmatmul.mubr.bf16.gmra.mrb[0].mxu0 %v897
        %v935 = vpop.f32.mrb[0].mxu0
        %v936 = vadd.f32 %v872, %v935
        %v937 = vpop.f32.mrb[0].mxu0
        %v938 = vpop.f32.mrb[0].mxu0
        %v939 = vadd.f32 %v877, %v938
        %v940 = vpop.f32.mrb[0].mxu0
        %941 = vmatprep.mubr.bf16.mxu0 0
        %942 = vmatmul.mubr.bf16.gmra.mrb[0].mxu0 %v898
        %v943 = vpop.f32.mrb[0].mxu0
        %v944 = vadd.f32 %v882, %v943
        %v945 = vpop.f32.mrb[0].mxu0
        %v946 = vpop.f32.mrb[0].mxu0
        %v947 = vadd.f32 %v887, %v946
        %v948 = vpop.f32.mrb[0].mxu0
        %949 = vdwg.mxu0
        %v950 = vpack.c.bf16 %v939, %v936
        %v951 = vpack.c.bf16 %v947, %v944
        %v954 = vunpack.c.l.b16 %v950
        %v955 = vunpack.c.h.b16 %v950
        %v956 = vunpack.c.l.b16 %v951
        %v957 = vunpack.c.h.b16 %v951
        %v958 = vpack.c.b16 %v954, %v954
        %v959 = vpack.c.b16 %v955, %v955
        %v960 = vpack.c.b16 %v956, %v956
        %v961 = vpack.c.b16 %v957, %v957
        %v966 = vld [vmem:[#allocation2] sm:$0xff]
        %v967 = vld [vmem:[#allocation2 + $0x8] sm:$0xff]
        %v970 = vunpack.c.l.b16 %v966
        %v971 = vunpack.c.h.b16 %v966
        %v972 = vunpack.c.l.b16 %v967
        %v973 = vunpack.c.h.b16 %v967
        %v974 = vpack.c.b16 %v970, %v970
        %v975 = vpack.c.b16 %v971, %v971
        %v976 = vpack.c.b16 %v972, %v972
        %v977 = vpack.c.b16 %v973, %v973
        %v978 = vld [vmem:[#allocation3] sm:$0xff]
        %v979 = vld [vmem:[#allocation3 + $0x8] sm:$0xff]
        %v982 = vunpack.c.l.b16 %v978
        %v983 = vunpack.c.h.b16 %v978
        %v984 = vunpack.c.l.b16 %v979
        %v985 = vunpack.c.h.b16 %v979
        %v986 = vpack.c.b16 %v982, %v982
        %v987 = vpack.c.b16 %v983, %v983
        %v988 = vpack.c.b16 %v984, %v984
        %v989 = vpack.c.b16 %v985, %v985
        %990 = vxpose.xlu0.c.b16.start [1/8] %v958, 128
        %991 = vxpose.xlu0.c.b16.cont [2/8] 0, 128
        %992 = vxpose.xlu0.c.b16.cont [3/8] 0, 128
        %993 = vxpose.xlu0.c.b16.cont [4/8] 0, 128
        %994 = vxpose.xlu0.c.b16.cont [5/8] 0, 128
        %995 = vxpose.xlu0.c.b16.cont [6/8] 0, 128
        %996 = vxpose.xlu0.c.b16.cont [7/8] 0, 128
        %997 = vxpose.xlu0.c.b16.end [8/8] 0, 128
        %v998 = vpop.trf.xlu0
        %v999 = vpop.trf.xlu0
        %v1000 = vpop.trf.xlu0
        %v1001 = vpop.trf.xlu0
        %v1002 = vpop.trf.xlu0
        %v1003 = vpop.trf.xlu0
        %v1004 = vpop.trf.xlu0
        %v1005 = vpop.trf.xlu0
        %vm1006 = vcmask 64512
        %v1008 = vsel %vm1006, %v998, 0
        %vm1010 = vcmask 1043456
        %v1012 = vsel %vm1010, %v974, 0
        %1014 = vmatprep.subr.bf16.mxu0 0
        %1015 = vmatpush1.bf16.msra.mxu0 %v1012
        %1016 = vmatprep.subr.bf16.mxu0 0
        %1017 = vmatpush1.bf16.msra.mxu0 0
        %1018 = vmatprep.subr.bf16.mxu0 0
        %1019 = vmatpush1.bf16.msra.mxu0 0
        %1020 = vmatprep.subr.bf16.mxu0 0
        %1021 = vmatpush1.bf16.msra.mxu0 0
        %1022 = vmatprep.subr.bf16.mxu0 0
        %1023 = vmatpush1.bf16.msra.mxu0 0
        %1024 = vmatprep.subr.bf16.mxu0 0
        %1025 = vmatpush1.bf16.msra.mxu0 0
        %1026 = vmatprep.subr.bf16.mxu0 0
        %1027 = vmatpush1.bf16.msra.mxu0 0
        %1028 = vmatprep.subr.bf16.mxu0 0
        %1029 = vmatpush1.bf16.msra.mxu0 0
        %1030 = vmatprep.subr.bf16.mxu0 0
        %1031 = vmatpush1.bf16.msra.mxu0 0
        %1032 = vmatprep.subr.bf16.mxu0 0
        %1033 = vmatpush1.bf16.msra.mxu0 0
        %1034 = vmatprep.subr.bf16.mxu0 0
        %1035 = vmatpush1.bf16.msra.mxu0 0
        %1036 = vmatprep.subr.bf16.mxu0 0
        %1037 = vmatpush1.bf16.msra.mxu0 0
        %1038 = vmatprep.subr.bf16.mxu0 0
        %1039 = vmatpush1.bf16.msra.mxu0 0
        %1040 = vmatprep.subr.bf16.mxu0 0
        %1041 = vmatpush1.bf16.msra.mxu0 0
        %1042 = vmatprep.subr.bf16.mxu0 0
        %1043 = vmatpush1.bf16.msra.mxu0 0
        %1044 = vmatprep.subr.bf16.mxu0 0
        %1045 = vmatpush1.bf16.msra.mxu0 0
        %1046 = vmatprep.mubr.bf16.mxu0 0
        %1047 = vmatmul.mubr.bf16.gmra.mrb[0].mxu0 %v1008
        %v1048 = vpop.f32.mrb[0].mxu0
        %v1049 = vadd.f32 0.0, %v1048
        %v1050 = vpop.f32.mrb[0].mxu0
        %v1051 = vpop.f32.mrb[0].mxu0
        %v1052 = vpop.f32.mrb[0].mxu0
        %1053 = vdwg.mxu0
        %1054 = vxpose.xlu0.c.b16.start [1/8] %v959, 128
        %1055 = vxpose.xlu0.c.b16.cont [2/8] 0, 128
        %1056 = vxpose.xlu0.c.b16.cont [3/8] 0, 128
        %1057 = vxpose.xlu0.c.b16.cont [4/8] 0, 128
        %1058 = vxpose.xlu0.c.b16.cont [5/8] 0, 128
        %1059 = vxpose.xlu0.c.b16.cont [6/8] 0, 128
        %1060 = vxpose.xlu0.c.b16.cont [7/8] 0, 128
        %1061 = vxpose.xlu0.c.b16.end [8/8] 0, 128
        %v1062 = vpop.trf.xlu0
        %v1063 = vpop.trf.xlu0
        %v1064 = vpop.trf.xlu0
        %v1065 = vpop.trf.xlu0
        %v1066 = vpop.trf.xlu0
        %v1067 = vpop.trf.xlu0
        %v1068 = vpop.trf.xlu0
        %v1069 = vpop.trf.xlu0
        %v1071 = vsel %vm1006, %v1062, 0
        %v1074 = vsel %vm1010, %v975, 0
        %1076 = vmatprep.subr.bf16.mxu0 0
        %1077 = vmatpush1.bf16.msra.mxu0 %v1074
        %1078 = vmatprep.subr.bf16.mxu0 0
        %1079 = vmatpush1.bf16.msra.mxu0 0
        %1080 = vmatprep.subr.bf16.mxu0 0
        %1081 = vmatpush1.bf16.msra.mxu0 0
        %1082 = vmatprep.subr.bf16.mxu0 0
        %1083 = vmatpush1.bf16.msra.mxu0 0
        %1084 = vmatprep.subr.bf16.mxu0 0
        %1085 = vmatpush1.bf16.msra.mxu0 0
        %1086 = vmatprep.subr.bf16.mxu0 0
        %1087 = vmatpush1.bf16.msra.mxu0 0
        %1088 = vmatprep.subr.bf16.mxu0 0
        %1089 = vmatpush1.bf16.msra.mxu0 0
        %1090 = vmatprep.subr.bf16.mxu0 0
        %1091 = vmatpush1.bf16.msra.mxu0 0
        %1092 = vmatprep.subr.bf16.mxu0 0
        %1093 = vmatpush1.bf16.msra.mxu0 0
        %1094 = vmatprep.subr.bf16.mxu0 0
        %1095 = vmatpush1.bf16.msra.mxu0 0
        %1096 = vmatprep.subr.bf16.mxu0 0
        %1097 = vmatpush1.bf16.msra.mxu0 0
        %1098 = vmatprep.subr.bf16.mxu0 0
        %1099 = vmatpush1.bf16.msra.mxu0 0
        %1100 = vmatprep.subr.bf16.mxu0 0
        %1101 = vmatpush1.bf16.msra.mxu0 0
        %1102 = vmatprep.subr.bf16.mxu0 0
        %1103 = vmatpush1.bf16.msra.mxu0 0
        %1104 = vmatprep.subr.bf16.mxu0 0
        %1105 = vmatpush1.bf16.msra.mxu0 0
        %1106 = vmatprep.subr.bf16.mxu0 0
        %1107 = vmatpush1.bf16.msra.mxu0 0
        %1108 = vmatprep.mubr.bf16.mxu0 0
        %1109 = vmatmul.mubr.bf16.gmra.mrb[0].mxu0 %v1071
        %v1110 = vpop.f32.mrb[0].mxu0
        %v1111 = vadd.f32 0.0, %v1110
        %v1112 = vpop.f32.mrb[0].mxu0
        %v1113 = vpop.f32.mrb[0].mxu0
        %v1114 = vpop.f32.mrb[0].mxu0
        %1115 = vdwg.mxu0
        %1116 = vxpose.xlu0.c.b16.start [1/8] %v960, 128
        %1117 = vxpose.xlu0.c.b16.cont [2/8] 0, 128
        %1118 = vxpose.xlu0.c.b16.cont [3/8] 0, 128
        %1119 = vxpose.xlu0.c.b16.cont [4/8] 0, 128
        %1120 = vxpose.xlu0.c.b16.cont [5/8] 0, 128
        %1121 = vxpose.xlu0.c.b16.cont [6/8] 0, 128
        %1122 = vxpose.xlu0.c.b16.cont [7/8] 0, 128
        %1123 = vxpose.xlu0.c.b16.end [8/8] 0, 128
        %v1124 = vpop.trf.xlu0
        %v1125 = vpop.trf.xlu0
        %v1126 = vpop.trf.xlu0
        %v1127 = vpop.trf.xlu0
        %v1128 = vpop.trf.xlu0
        %v1129 = vpop.trf.xlu0
        %v1130 = vpop.trf.xlu0
        %v1131 = vpop.trf.xlu0
        %v1133 = vsel %vm1006, %v1124, 0
        %v1136 = vsel %vm1010, %v976, 0
        %1138 = vmatprep.subr.bf16.mxu0 0
        %1139 = vmatpush1.bf16.msra.mxu0 %v1136
        %1140 = vmatprep.subr.bf16.mxu0 0
        %1141 = vmatpush1.bf16.msra.mxu0 0
        %1142 = vmatprep.subr.bf16.mxu0 0
        %1143 = vmatpush1.bf16.msra.mxu0 0
        %1144 = vmatprep.subr.bf16.mxu0 0
        %1145 = vmatpush1.bf16.msra.mxu0 0
        %1146 = vmatprep.subr.bf16.mxu0 0
        %1147 = vmatpush1.bf16.msra.mxu0 0
        %1148 = vmatprep.subr.bf16.mxu0 0
        %1149 = vmatpush1.bf16.msra.mxu0 0
        %1150 = vmatprep.subr.bf16.mxu0 0
        %1151 = vmatpush1.bf16.msra.mxu0 0
        %1152 = vmatprep.subr.bf16.mxu0 0
        %1153 = vmatpush1.bf16.msra.mxu0 0
        %1154 = vmatprep.subr.bf16.mxu0 0
        %1155 = vmatpush1.bf16.msra.mxu0 0
        %1156 = vmatprep.subr.bf16.mxu0 0
        %1157 = vmatpush1.bf16.msra.mxu0 0
        %1158 = vmatprep.subr.bf16.mxu0 0
        %1159 = vmatpush1.bf16.msra.mxu0 0
        %1160 = vmatprep.subr.bf16.mxu0 0
        %1161 = vmatpush1.bf16.msra.mxu0 0
        %1162 = vmatprep.subr.bf16.mxu0 0
        %1163 = vmatpush1.bf16.msra.mxu0 0
        %1164 = vmatprep.subr.bf16.mxu0 0
        %1165 = vmatpush1.bf16.msra.mxu0 0
        %1166 = vmatprep.subr.bf16.mxu0 0
        %1167 = vmatpush1.bf16.msra.mxu0 0
        %1168 = vmatprep.subr.bf16.mxu0 0
        %1169 = vmatpush1.bf16.msra.mxu0 0
        %1170 = vmatprep.mubr.bf16.mxu0 0
        %1171 = vmatmul.mubr.bf16.gmra.mrb[0].mxu0 %v1133
        %v1172 = vpop.f32.mrb[0].mxu0
        %v1173 = vadd.f32 0.0, %v1172
        %v1174 = vpop.f32.mrb[0].mxu0
        %v1175 = vpop.f32.mrb[0].mxu0
        %v1176 = vpop.f32.mrb[0].mxu0
        %1177 = vdwg.mxu0
        %1178 = vxpose.xlu0.c.b16.start [1/8] %v961, 128
        %1179 = vxpose.xlu0.c.b16.cont [2/8] 0, 128
        %1180 = vxpose.xlu0.c.b16.cont [3/8] 0, 128
        %1181 = vxpose.xlu0.c.b16.cont [4/8] 0, 128
        %1182 = vxpose.xlu0.c.b16.cont [5/8] 0, 128
        %1183 = vxpose.xlu0.c.b16.cont [6/8] 0, 128
        %1184 = vxpose.xlu0.c.b16.cont [7/8] 0, 128
        %1185 = vxpose.xlu0.c.b16.end [8/8] 0, 128
        %v1186 = vpop.trf.xlu0
        %v1187 = vpop.trf.xlu0
        %v1188 = vpop.trf.xlu0
        %v1189 = vpop.trf.xlu0
        %v1190 = vpop.trf.xlu0
        %v1191 = vpop.trf.xlu0
        %v1192 = vpop.trf.xlu0
        %v1193 = vpop.trf.xlu0
        %v1195 = vsel %vm1006, %v1186, 0
        %v1198 = vsel %vm1010, %v977, 0
        %1200 = vmatprep.subr.bf16.mxu0 0
        %1201 = vmatpush1.bf16.msra.mxu0 %v1198
        %1202 = vmatprep.subr.bf16.mxu0 0
        %1203 = vmatpush1.bf16.msra.mxu0 0
        %1204 = vmatprep.subr.bf16.mxu0 0
        %1205 = vmatpush1.bf16.msra.mxu0 0
        %1206 = vmatprep.subr.bf16.mxu0 0
        %1207 = vmatpush1.bf16.msra.mxu0 0
        %1208 = vmatprep.subr.bf16.mxu0 0
        %1209 = vmatpush1.bf16.msra.mxu0 0
        %1210 = vmatprep.subr.bf16.mxu0 0
        %1211 = vmatpush1.bf16.msra.mxu0 0
        %1212 = vmatprep.subr.bf16.mxu0 0
        %1213 = vmatpush1.bf16.msra.mxu0 0
        %1214 = vmatprep.subr.bf16.mxu0 0
        %1215 = vmatpush1.bf16.msra.mxu0 0
        %1216 = vmatprep.subr.bf16.mxu0 0
        %1217 = vmatpush1.bf16.msra.mxu0 0
        %1218 = vmatprep.subr.bf16.mxu0 0
        %1219 = vmatpush1.bf16.msra.mxu0 0
        %1220 = vmatprep.subr.bf16.mxu0 0
        %1221 = vmatpush1.bf16.msra.mxu0 0
        %1222 = vmatprep.subr.bf16.mxu0 0
        %1223 = vmatpush1.bf16.msra.mxu0 0
        %1224 = vmatprep.subr.bf16.mxu0 0
        %1225 = vmatpush1.bf16.msra.mxu0 0
        %1226 = vmatprep.subr.bf16.mxu0 0
        %1227 = vmatpush1.bf16.msra.mxu0 0
        %1228 = vmatprep.subr.bf16.mxu0 0
        %1229 = vmatpush1.bf16.msra.mxu0 0
        %1230 = vmatprep.subr.bf16.mxu0 0
        %1231 = vmatpush1.bf16.msra.mxu0 0
        %1232 = vmatprep.mubr.bf16.mxu0 0
        %1233 = vmatmul.mubr.bf16.gmra.mrb[0].mxu0 %v1195
        %v1234 = vpop.f32.mrb[0].mxu0
        %v1235 = vadd.f32 0.0, %v1234
        %v1236 = vpop.f32.mrb[0].mxu0
        %v1237 = vpop.f32.mrb[0].mxu0
        %v1238 = vpop.f32.mrb[0].mxu0
        %1239 = vdwg.mxu0
        %v1240 = vld [vmem:[%s590] sm:$0x1]
        %vm1241 = vcmp.ne.s32.totalorder %v1240, 0
        %v1242 = vsel %vm1241, 1, 0
        %v1243 = vlaneseq
        %v1244 = vshrl.u32 %v1243, 7
        %v1245 = vsub.s32 0, %v1244
        %v1246 = vrot.slane %v1242, %v1245
        %vm1247 = vcmp.eq.s32.totalorder %v1246, 1
        %v1248 = vsel %vm1247, -1e+09, %v1049
        %v1249 = vsel %vm1247, -1e+09, %v1111
        %v1250 = vsel %vm1247, -1e+09, %v1173
        %v1251 = vsel %vm1247, -1e+09, %v1235
        %v1252 = vsel %vm1006, %v1248, -inf
        %1253 = vmax.xlane.f32.xlu0 %v1252
        %v1254 = vpop.xlane.xlu0 %1253
        %v1255 = vsel %vm1006, %v1249, -inf
        %1256 = vmax.xlane.f32.xlu0 %v1255
        %v1257 = vpop.xlane.xlu0 %1256
        %v1258 = vsel %vm1006, %v1250, -inf
        %1259 = vmax.xlane.f32.xlu0 %v1258
        %v1260 = vpop.xlane.xlu0 %1259
        %v1261 = vsel %vm1006, %v1251, -inf
        %1262 = vmax.xlane.f32.xlu0 %v1261
        %v1263 = vpop.xlane.xlu0 %1262
        %v1264 = vsub.f32 %v1248, %v1254
        %v1265 = vsub.f32 %v1249, %v1257
        %v1266 = vsub.f32 %v1250, %v1260
        %v1267 = vsub.f32 %v1251, %v1263
        %v1268 = vmul.f32 %v1264, 1.442695
        %v1269 = vpow.pop %v1268
        %v1270 = vmul.f32 %v1265, 1.442695
        %v1271 = vpow.pop %v1270
        %v1272 = vmul.f32 %v1266, 1.442695
        %v1273 = vpow.pop %v1272
        %v1274 = vmul.f32 %v1267, 1.442695
        %v1275 = vpow.pop %v1274
        %v1276 = vsel %vm1006, %v1269, 0.0
        %1277 = vadd.xlane.f32.xlu0 %v1276
        %v1278 = vpop.xlane.xlu0 %1277
        %v1279 = vsel %vm1006, %v1271, 0.0
        %1280 = vadd.xlane.f32.xlu0 %v1279
        %v1281 = vpop.xlane.xlu0 %1280
        %v1282 = vsel %vm1006, %v1273, 0.0
        %1283 = vadd.xlane.f32.xlu0 %v1282
        %v1284 = vpop.xlane.xlu0 %1283
        %v1285 = vsel %vm1006, %v1275, 0.0
        %1286 = vadd.xlane.f32.xlu0 %v1285
        %v1287 = vpop.xlane.xlu0 %1286
        %v1288 = vrcp.pop %v1278
        %v1289 = vrcp.pop %v1281
        %v1290 = vrcp.pop %v1284
        %v1291 = vrcp.pop %v1287
        %v1292 = vmul.f32 %v1269, %v1288
        %v1293 = vmul.f32 %v1271, %v1289
        %v1294 = vmul.f32 %v1273, %v1290
        %v1295 = vmul.f32 %v1275, %v1291
        %v1296 = vpack.c.bf16 %v1292, %v1292
        %v1297 = vpack.c.bf16 %v1293, %v1293
        %v1298 = vpack.c.bf16 %v1294, %v1294
        %v1299 = vpack.c.bf16 %v1295, %v1295
        %v1301 = vsel %vm1006, %v986, 0
        %v1304 = vsel %vm1006, %v1296, 0
        %1306 = vmatprep.subr.bf16.mxu0 0
        %1307 = vmatpush1.bf16.xpose.msra.mxu0 %v1304
        %1308 = vmatprep.subr.bf16.mxu0 0
        %1309 = vmatpush1.bf16.xpose.msra.mxu0 0
        %1310 = vmatprep.subr.bf16.mxu0 0
        %1311 = vmatpush1.bf16.xpose.msra.mxu0 0
        %1312 = vmatprep.subr.bf16.mxu0 0
        %1313 = vmatpush1.bf16.xpose.msra.mxu0 0
        %1314 = vmatprep.subr.bf16.mxu0 0
        %1315 = vmatpush1.bf16.xpose.msra.mxu0 0
        %1316 = vmatprep.subr.bf16.mxu0 0
        %1317 = vmatpush1.bf16.xpose.msra.mxu0 0
        %1318 = vmatprep.subr.bf16.mxu0 0
        %1319 = vmatpush1.bf16.xpose.msra.mxu0 0
        %1320 = vmatprep.subr.bf16.mxu0 0
        %1321 = vmatpush1.bf16.xpose.msra.mxu0 0
        %1322 = vmatprep.subr.bf16.mxu0 0
        %1323 = vmatpush1.bf16.xpose.msra.mxu0 0
        %1324 = vmatprep.subr.bf16.mxu0 0
        %1325 = vmatpush1.bf16.xpose.msra.mxu0 0
        %1326 = vmatprep.subr.bf16.mxu0 0
        %1327 = vmatpush1.bf16.xpose.msra.mxu0 0
        %1328 = vmatprep.subr.bf16.mxu0 0
        %1329 = vmatpush1.bf16.xpose.msra.mxu0 0
        %1330 = vmatprep.subr.bf16.mxu0 0
        %1331 = vmatpush1.bf16.xpose.msra.mxu0 0
        %1332 = vmatprep.subr.bf16.mxu0 0
        %1333 = vmatpush1.bf16.xpose.msra.mxu0 0
        %1334 = vmatprep.subr.bf16.mxu0 0
        %1335 = vmatpush1.bf16.xpose.msra.mxu0 0
        %1336 = vmatprep.subr.bf16.mxu0 0
        %1337 = vmatpush1.bf16.xpose.msra.mxu0 0
        %1338 = vmatprep.mubr.bf16.mxu0 0
        %1339 = vmatmul.mubr.bf16.gmra.mrb[0].mxu0 %v1301
        %v1340 = vpop.f32.mrb[0].mxu0
        %v1341 = vadd.f32 0.0, %v1340
        %v1342 = vpop.f32.mrb[0].mxu0
        %v1343 = vpop.f32.mrb[0].mxu0
        %v1344 = vpop.f32.mrb[0].mxu0
        %1345 = vdwg.mxu0
        %v1347 = vsel %vm1006, %v987, 0
        %v1350 = vsel %vm1006, %v1297, 0
        %1352 = vmatprep.subr.bf16.mxu0 0
        %1353 = vmatpush1.bf16.xpose.msra.mxu0 %v1350
        %1354 = vmatprep.subr.bf16.mxu0 0
        %1355 = vmatpush1.bf16.xpose.msra.mxu0 0
        %1356 = vmatprep.subr.bf16.mxu0 0
        %1357 = vmatpush1.bf16.xpose.msra.mxu0 0
        %1358 = vmatprep.subr.bf16.mxu0 0
        %1359 = vmatpush1.bf16.xpose.msra.mxu0 0
        %1360 = vmatprep.subr.bf16.mxu0 0
        %1361 = vmatpush1.bf16.xpose.msra.mxu0 0
        %1362 = vmatprep.subr.bf16.mxu0 0
        %1363 = vmatpush1.bf16.xpose.msra.mxu0 0
        %1364 = vmatprep.subr.bf16.mxu0 0
        %1365 = vmatpush1.bf16.xpose.msra.mxu0 0
        %1366 = vmatprep.subr.bf16.mxu0 0
        %1367 = vmatpush1.bf16.xpose.msra.mxu0 0
        %1368 = vmatprep.subr.bf16.mxu0 0
        %1369 = vmatpush1.bf16.xpose.msra.mxu0 0
        %1370 = vmatprep.subr.bf16.mxu0 0
        %1371 = vmatpush1.bf16.xpose.msra.mxu0 0
        %1372 = vmatprep.subr.bf16.mxu0 0
        %1373 = vmatpush1.bf16.xpose.msra.mxu0 0
        %1374 = vmatprep.subr.bf16.mxu0 0
        %1375 = vmatpush1.bf16.xpose.msra.mxu0 0
        %1376 = vmatprep.subr.bf16.mxu0 0
        %1377 = vmatpush1.bf16.xpose.msra.mxu0 0
        %1378 = vmatprep.subr.bf16.mxu0 0
        %1379 = vmatpush1.bf16.xpose.msra.mxu0 0
        %1380 = vmatprep.subr.bf16.mxu0 0
        %1381 = vmatpush1.bf16.xpose.msra.mxu0 0
        %1382 = vmatprep.subr.bf16.mxu0 0
        %1383 = vmatpush1.bf16.xpose.msra.mxu0 0
        %1384 = vmatprep.mubr.bf16.mxu0 0
        %1385 = vmatmul.mubr.bf16.gmra.mrb[0].mxu0 %v1347
        %v1386 = vpop.f32.mrb[0].mxu0
        %v1387 = vadd.f32 0.0, %v1386
        %v1388 = vpop.f32.mrb[0].mxu0
        %v1389 = vpop.f32.mrb[0].mxu0
        %v1390 = vpop.f32.mrb[0].mxu0
        %1391 = vdwg.mxu0
        %v1393 = vsel %vm1006, %v988, 0
        %v1396 = vsel %vm1006, %v1298, 0
        %1398 = vmatprep.subr.bf16.mxu0 0
        %1399 = vmatpush1.bf16.xpose.msra.mxu0 %v1396
        %1400 = vmatprep.subr.bf16.mxu0 0
        %1401 = vmatpush1.bf16.xpose.msra.mxu0 0
        %1402 = vmatprep.subr.bf16.mxu0 0
        %1403 = vmatpush1.bf16.xpose.msra.mxu0 0
        %1404 = vmatprep.subr.bf16.mxu0 0
        %1405 = vmatpush1.bf16.xpose.msra.mxu0 0
        %1406 = vmatprep.subr.bf16.mxu0 0
        %1407 = vmatpush1.bf16.xpose.msra.mxu0 0
        %1408 = vmatprep.subr.bf16.mxu0 0
        %1409 = vmatpush1.bf16.xpose.msra.mxu0 0
        %1410 = vmatprep.subr.bf16.mxu0 0
        %1411 = vmatpush1.bf16.xpose.msra.mxu0 0
        %1412 = vmatprep.subr.bf16.mxu0 0
        %1413 = vmatpush1.bf16.xpose.msra.mxu0 0
        %1414 = vmatprep.subr.bf16.mxu0 0
        %1415 = vmatpush1.bf16.xpose.msra.mxu0 0
        %1416 = vmatprep.subr.bf16.mxu0 0
        %1417 = vmatpush1.bf16.xpose.msra.mxu0 0
        %1418 = vmatprep.subr.bf16.mxu0 0
        %1419 = vmatpush1.bf16.xpose.msra.mxu0 0
        %1420 = vmatprep.subr.bf16.mxu0 0
        %1421 = vmatpush1.bf16.xpose.msra.mxu0 0
        %1422 = vmatprep.subr.bf16.mxu0 0
        %1423 = vmatpush1.bf16.xpose.msra.mxu0 0
        %1424 = vmatprep.subr.bf16.mxu0 0
        %1425 = vmatpush1.bf16.xpose.msra.mxu0 0
        %1426 = vmatprep.subr.bf16.mxu0 0
        %1427 = vmatpush1.bf16.xpose.msra.mxu0 0
        %1428 = vmatprep.subr.bf16.mxu0 0
        %1429 = vmatpush1.bf16.xpose.msra.mxu0 0
        %1430 = vmatprep.mubr.bf16.mxu0 0
        %1431 = vmatmul.mubr.bf16.gmra.mrb[0].mxu0 %v1393
        %v1432 = vpop.f32.mrb[0].mxu0
        %v1433 = vadd.f32 0.0, %v1432
        %v1434 = vpop.f32.mrb[0].mxu0
        %v1435 = vpop.f32.mrb[0].mxu0
        %v1436 = vpop.f32.mrb[0].mxu0
        %1437 = vdwg.mxu0
        %v1439 = vsel %vm1006, %v989, 0
        %v1442 = vsel %vm1006, %v1299, 0
        %1444 = vmatprep.subr.bf16.mxu0 0
        %1445 = vmatpush1.bf16.xpose.msra.mxu0 %v1442
        %1446 = vmatprep.subr.bf16.mxu0 0
        %1447 = vmatpush1.bf16.xpose.msra.mxu0 0
        %1448 = vmatprep.subr.bf16.mxu0 0
        %1449 = vmatpush1.bf16.xpose.msra.mxu0 0
        %1450 = vmatprep.subr.bf16.mxu0 0
        %1451 = vmatpush1.bf16.xpose.msra.mxu0 0
        %1452 = vmatprep.subr.bf16.mxu0 0
        %1453 = vmatpush1.bf16.xpose.msra.mxu0 0
        %1454 = vmatprep.subr.bf16.mxu0 0
        %1455 = vmatpush1.bf16.xpose.msra.mxu0 0
        %1456 = vmatprep.subr.bf16.mxu0 0
        %1457 = vmatpush1.bf16.xpose.msra.mxu0 0
        %1458 = vmatprep.subr.bf16.mxu0 0
        %1459 = vmatpush1.bf16.xpose.msra.mxu0 0
        %1460 = vmatprep.subr.bf16.mxu0 0
        %1461 = vmatpush1.bf16.xpose.msra.mxu0 0
        %1462 = vmatprep.subr.bf16.mxu0 0
        %1463 = vmatpush1.bf16.xpose.msra.mxu0 0
        %1464 = vmatprep.subr.bf16.mxu0 0
        %1465 = vmatpush1.bf16.xpose.msra.mxu0 0
        %1466 = vmatprep.subr.bf16.mxu0 0
        %1467 = vmatpush1.bf16.xpose.msra.mxu0 0
        %1468 = vmatprep.subr.bf16.mxu0 0
        %1469 = vmatpush1.bf16.xpose.msra.mxu0 0
        %1470 = vmatprep.subr.bf16.mxu0 0
        %1471 = vmatpush1.bf16.xpose.msra.mxu0 0
        %1472 = vmatprep.subr.bf16.mxu0 0
        %1473 = vmatpush1.bf16.xpose.msra.mxu0 0
        %1474 = vmatprep.subr.bf16.mxu0 0
        %1475 = vmatpush1.bf16.xpose.msra.mxu0 0
        %1476 = vmatprep.mubr.bf16.mxu0 0
        %1477 = vmatmul.mubr.bf16.gmra.mrb[0].mxu0 %v1439
        %v1478 = vpop.f32.mrb[0].mxu0
        %v1479 = vadd.f32 0.0, %v1478
        %v1480 = vpop.f32.mrb[0].mxu0
        %v1481 = vpop.f32.mrb[0].mxu0
        %v1482 = vpop.f32.mrb[0].mxu0
        %1483 = vdwg.mxu0
        %v1484 = vpack.c.bf16 %v1341, %v1341
        %v1485 = vpack.c.bf16 %v1387, %v1387
        %v1486 = vpack.c.bf16 %v1433, %v1433
        %v1487 = vpack.c.bf16 %v1479, %v1479
        %v1488 = vld [vmem:[%s9] sm:$0xf]
        %v1489 = vld [vmem:[%s9 + $0x4] sm:$0xf]
        %v1490 = vld [vmem:[%s9 + $0x8] sm:$0xf]
        %v1491 = vld [vmem:[%s9 + $0xc] sm:$0xf]
        %v1492 = vld [vmem:[%s10] sm:$0x1]
        %v1494 = vlaneseq
        %v1495 = vshrl.u32 %v1494, 7
        %v1496 = vsub.s32 0, %v1495
        %v1497 = vrot.slane %v1492, %v1496
        %v1503 = vunpack.c.l.b16 %v1484
        %v1504 = vunpack.c.l.b16 %v1485
        %v1505 = vunpack.c.l.b16 %v1486
        %v1506 = vunpack.c.l.b16 %v1487
        %v1507 = vpack.c.b16 %v1504, %v1503
        %v1508 = vpack.c.b16 %v1506, %v1505
        %1511 = vxpose.xlu0.c.b16.start [1/8] %v1507, 128
        %1512 = vxpose.xlu0.c.b16.cont [2/8] %v1508, 128
        %1513 = vxpose.xlu0.c.b16.cont [3/8] 0, 128
        %1514 = vxpose.xlu0.c.b16.cont [4/8] 0, 128
        %1515 = vxpose.xlu0.c.b16.cont [5/8] 0, 128
        %1516 = vxpose.xlu0.c.b16.cont [6/8] 0, 128
        %1517 = vxpose.xlu0.c.b16.cont [7/8] 0, 128
        %1518 = vxpose.xlu0.c.b16.end [8/8] 0, 128
        %v1519 = vpop.trf.xlu0
        %v1520 = vpop.trf.xlu0
        %v1521 = vpop.trf.xlu0
        %v1522 = vpop.trf.xlu0
        %v1523 = vpop.trf.xlu0
        %v1524 = vpop.trf.xlu0
        %v1525 = vpop.trf.xlu0
        %v1526 = vpop.trf.xlu0
        %v1531 = vunpack.c.l.b16 %v1488
        %v1532 = vunpack.c.l.b16 %v1489
        %v1533 = vunpack.c.l.b16 %v1490
        %v1534 = vunpack.c.l.b16 %v1491
        %v1535 = vpack.c.b16 %v1532, %v1531
        %v1536 = vpack.c.b16 %v1534, %v1533
        %vm1539 = vcmask 261120
        %v1541 = vsel %vm1539, %v1519, 0
        %1543 = vmatprep.subr.bf16.mxu0 0
        %1544 = vmatpush1.bf16.msra.mxu0 %v1535
        %1545 = vmatprep.subr.bf16.mxu0 0
        %1546 = vmatpush1.bf16.msra.mxu0 %v1536
        %1547 = vmatprep.subr.bf16.mxu0 0
        %1548 = vmatpush1.bf16.msra.mxu0 0
        %1549 = vmatprep.subr.bf16.mxu0 0
        %1550 = vmatpush1.bf16.msra.mxu0 0
        %1551 = vmatprep.subr.bf16.mxu0 0
        %1552 = vmatpush1.bf16.msra.mxu0 0
        %1553 = vmatprep.subr.bf16.mxu0 0
        %1554 = vmatpush1.bf16.msra.mxu0 0
        %1555 = vmatprep.subr.bf16.mxu0 0
        %1556 = vmatpush1.bf16.msra.mxu0 0
        %1557 = vmatprep.subr.bf16.mxu0 0
        %1558 = vmatpush1.bf16.msra.mxu0 0
        %1559 = vmatprep.subr.bf16.mxu0 0
        %1560 = vmatpush1.bf16.msra.mxu0 0
        %1561 = vmatprep.subr.bf16.mxu0 0
        %1562 = vmatpush1.bf16.msra.mxu0 0
        %1563 = vmatprep.subr.bf16.mxu0 0
        %1564 = vmatpush1.bf16.msra.mxu0 0
        %1565 = vmatprep.subr.bf16.mxu0 0
        %1566 = vmatpush1.bf16.msra.mxu0 0
        %1567 = vmatprep.subr.bf16.mxu0 0
        %1568 = vmatpush1.bf16.msra.mxu0 0
        %1569 = vmatprep.subr.bf16.mxu0 0
        %1570 = vmatpush1.bf16.msra.mxu0 0
        %1571 = vmatprep.subr.bf16.mxu0 0
        %1572 = vmatpush1.bf16.msra.mxu0 0
        %1573 = vmatprep.subr.bf16.mxu0 0
        %1574 = vmatpush1.bf16.msra.mxu0 0
        %1575 = vmatprep.mubr.bf16.mxu0 0
        %1576 = vmatmul.mubr.bf16.gmra.mrb[0].mxu0 %v1541
        %v1577 = vpop.f32.mrb[0].mxu0
        %v1578 = vadd.f32 %v1497, %v1577
        %v1579 = vpop.f32.mrb[0].mxu0
        %v1580 = vpop.f32.mrb[0].mxu0
        %v1581 = vpop.f32.mrb[0].mxu0
        %1582 = vdwg.mxu0
        %v1583 = vld [vmem:[%s11] sm:$0xf]
        %v1584 = vld [vmem:[%s11 + $0x4] sm:$0xf]
        %v1585 = vld [vmem:[%s11 + $0x8] sm:$0xf]
        %v1586 = vld [vmem:[%s11 + $0xc] sm:$0xf]
        %v1587 = vld [vmem:[%s11 + $0x10] sm:$0xf]
        %v1588 = vld [vmem:[%s11 + $0x14] sm:$0xf]
        %v1589 = vld [vmem:[%s11 + $0x18] sm:$0xf]
        %v1590 = vld [vmem:[%s11 + $0x1c] sm:$0xf]
        %v1591 = vld [vmem:[%s11 + $0x20] sm:$0xf]
        %v1592 = vld [vmem:[%s11 + $0x24] sm:$0xf]
        %v1593 = vld [vmem:[%s11 + $0x28] sm:$0xf]
        %v1594 = vld [vmem:[%s11 + $0x2c] sm:$0xf]
        %v1595 = vld [vmem:[%s11 + $0x30] sm:$0xf]
        %v1596 = vld [vmem:[%s11 + $0x34] sm:$0xf]
        %v1597 = vld [vmem:[%s11 + $0x38] sm:$0xf]
        %v1598 = vld [vmem:[%s11 + $0x3c] sm:$0xf]
        %v1599 = vld [vmem:[%s12] sm:$0x1]
        %v1601 = vlaneseq
        %v1602 = vshrl.u32 %v1601, 7
        %v1603 = vsub.s32 0, %v1602
        %v1604 = vrot.slane %v1599, %v1603
        %v1622 = vunpack.c.l.b16 %v1583
        %v1623 = vunpack.c.l.b16 %v1584
        %v1624 = vunpack.c.l.b16 %v1585
        %v1625 = vunpack.c.l.b16 %v1586
        %v1626 = vunpack.c.l.b16 %v1587
        %v1627 = vunpack.c.l.b16 %v1588
        %v1628 = vunpack.c.l.b16 %v1589
        %v1629 = vunpack.c.l.b16 %v1590
        %v1630 = vunpack.c.l.b16 %v1591
        %v1631 = vunpack.c.l.b16 %v1592
        %v1632 = vunpack.c.l.b16 %v1593
        %v1633 = vunpack.c.l.b16 %v1594
        %v1634 = vunpack.c.l.b16 %v1595
        %v1635 = vunpack.c.l.b16 %v1596
        %v1636 = vunpack.c.l.b16 %v1597
        %v1637 = vunpack.c.l.b16 %v1598
        %v1638 = vpack.c.b16 %v1623, %v1622
        %v1639 = vpack.c.b16 %v1625, %v1624
        %v1640 = vpack.c.b16 %v1627, %v1626
        %v1641 = vpack.c.b16 %v1629, %v1628
        %v1642 = vpack.c.b16 %v1631, %v1630
        %v1643 = vpack.c.b16 %v1633, %v1632
        %v1644 = vpack.c.b16 %v1635, %v1634
        %v1645 = vpack.c.b16 %v1637, %v1636
        %1654 = vmatprep.subr.bf16.mxu0 0
        %1655 = vmatpush1.bf16.msra.mxu0 %v1638
        %1656 = vmatprep.subr.bf16.mxu0 0
        %1657 = vmatpush1.bf16.msra.mxu0 %v1639
        %1658 = vmatprep.subr.bf16.mxu0 0
        %1659 = vmatpush1.bf16.msra.mxu0 %v1640
        %1660 = vmatprep.subr.bf16.mxu0 0
        %1661 = vmatpush1.bf16.msra.mxu0 %v1641
        %1662 = vmatprep.subr.bf16.mxu0 0
        %1663 = vmatpush1.bf16.msra.mxu0 %v1642
        %1664 = vmatprep.subr.bf16.mxu0 0
        %1665 = vmatpush1.bf16.msra.mxu0 %v1643
        %1666 = vmatprep.subr.bf16.mxu0 0
        %1667 = vmatpush1.bf16.msra.mxu0 %v1644
        %1668 = vmatprep.subr.bf16.mxu0 0
        %1669 = vmatpush1.bf16.msra.mxu0 %v1645
        %1670 = vmatprep.subr.bf16.mxu0 0
        %1671 = vmatpush1.bf16.msra.mxu0 0
        %1672 = vmatprep.subr.bf16.mxu0 0
        %1673 = vmatpush1.bf16.msra.mxu0 0
        %1674 = vmatprep.subr.bf16.mxu0 0
        %1675 = vmatpush1.bf16.msra.mxu0 0
        %1676 = vmatprep.subr.bf16.mxu0 0
        %1677 = vmatpush1.bf16.msra.mxu0 0
        %1678 = vmatprep.subr.bf16.mxu0 0
        %1679 = vmatpush1.bf16.msra.mxu0 0
        %1680 = vmatprep.subr.bf16.mxu0 0
        %1681 = vmatpush1.bf16.msra.mxu0 0
        %1682 = vmatprep.subr.bf16.mxu0 0
        %1683 = vmatpush1.bf16.msra.mxu0 0
        %1684 = vmatprep.subr.bf16.mxu0 0
        %1685 = vmatpush1.bf16.msra.mxu0 0
        %1686 = vmatprep.mubr.bf16.mxu0 0
        %1687 = vmatmul.mubr.bf16.gmra.mrb[0].mxu0 %v860
        %v1688 = vpop.f32.mrb[0].mxu0
        %v1689 = vadd.f32 %v1604, %v1688
        %v1690 = vpop.f32.mrb[0].mxu0
        %v1691 = vpop.f32.mrb[0].mxu0
        %v1692 = vpop.f32.mrb[0].mxu0
        %1693 = vdwg.mxu0
        %v1694 = vld [vmem:[%s13] sm:$0xf]
        %v1695 = vld [vmem:[%s13 + $0x4] sm:$0xf]
        %v1696 = vld [vmem:[%s13 + $0x8] sm:$0xf]
        %v1697 = vld [vmem:[%s13 + $0xc] sm:$0xf]
        %v1698 = vld [vmem:[%s13 + $0x10] sm:$0xf]
        %v1699 = vld [vmem:[%s13 + $0x14] sm:$0xf]
        %v1700 = vld [vmem:[%s13 + $0x18] sm:$0xf]
        %v1701 = vld [vmem:[%s13 + $0x1c] sm:$0xf]
        %v1702 = vld [vmem:[%s13 + $0x20] sm:$0xf]
        %v1703 = vld [vmem:[%s13 + $0x24] sm:$0xf]
        %v1704 = vld [vmem:[%s13 + $0x28] sm:$0xf]
        %v1705 = vld [vmem:[%s13 + $0x2c] sm:$0xf]
        %v1706 = vld [vmem:[%s13 + $0x30] sm:$0xf]
        %v1707 = vld [vmem:[%s13 + $0x34] sm:$0xf]
        %v1708 = vld [vmem:[%s13 + $0x38] sm:$0xf]
        %v1709 = vld [vmem:[%s13 + $0x3c] sm:$0xf]
        %v1710 = vld [vmem:[%s14] sm:$0x1]
        %v1712 = vlaneseq
        %v1713 = vshrl.u32 %v1712, 7
        %v1714 = vsub.s32 0, %v1713
        %v1715 = vrot.slane %v1710, %v1714
        %v1733 = vunpack.c.l.b16 %v1694
        %v1734 = vunpack.c.l.b16 %v1695
        %v1735 = vunpack.c.l.b16 %v1696
        %v1736 = vunpack.c.l.b16 %v1697
        %v1737 = vunpack.c.l.b16 %v1698
        %v1738 = vunpack.c.l.b16 %v1699
        %v1739 = vunpack.c.l.b16 %v1700
        %v1740 = vunpack.c.l.b16 %v1701
        %v1741 = vunpack.c.l.b16 %v1702
        %v1742 = vunpack.c.l.b16 %v1703
        %v1743 = vunpack.c.l.b16 %v1704
        %v1744 = vunpack.c.l.b16 %v1705
        %v1745 = vunpack.c.l.b16 %v1706
        %v1746 = vunpack.c.l.b16 %v1707
        %v1747 = vunpack.c.l.b16 %v1708
        %v1748 = vunpack.c.l.b16 %v1709
        %v1749 = vpack.c.b16 %v1734, %v1733
        %v1750 = vpack.c.b16 %v1736, %v1735
        %v1751 = vpack.c.b16 %v1738, %v1737
        %v1752 = vpack.c.b16 %v1740, %v1739
        %v1753 = vpack.c.b16 %v1742, %v1741
        %v1754 = vpack.c.b16 %v1744, %v1743
        %v1755 = vpack.c.b16 %v1746, %v1745
        %v1756 = vpack.c.b16 %v1748, %v1747
        %1765 = vmatprep.subr.bf16.mxu0 0
        %1766 = vmatpush1.bf16.msra.mxu0 %v1749
        %1767 = vmatprep.subr.bf16.mxu0 0
        %1768 = vmatpush1.bf16.msra.mxu0 %v1750
        %1769 = vmatprep.subr.bf16.mxu0 0
        %1770 = vmatpush1.bf16.msra.mxu0 %v1751
        %1771 = vmatprep.subr.bf16.mxu0 0
        %1772 = vmatpush1.bf16.msra.mxu0 %v1752
        %1773 = vmatprep.subr.bf16.mxu0 0
        %1774 = vmatpush1.bf16.msra.mxu0 %v1753
        %1775 = vmatprep.subr.bf16.mxu0 0
        %1776 = vmatpush1.bf16.msra.mxu0 %v1754
        %1777 = vmatprep.subr.bf16.mxu0 0
        %1778 = vmatpush1.bf16.msra.mxu0 %v1755
        %1779 = vmatprep.subr.bf16.mxu0 0
        %1780 = vmatpush1.bf16.msra.mxu0 %v1756
        %1781 = vmatprep.subr.bf16.mxu0 0
        %1782 = vmatpush1.bf16.msra.mxu0 0
        %1783 = vmatprep.subr.bf16.mxu0 0
        %1784 = vmatpush1.bf16.msra.mxu0 0
        %1785 = vmatprep.subr.bf16.mxu0 0
        %1786 = vmatpush1.bf16.msra.mxu0 0
        %1787 = vmatprep.subr.bf16.mxu0 0
        %1788 = vmatpush1.bf16.msra.mxu0 0
        %1789 = vmatprep.subr.bf16.mxu0 0
        %1790 = vmatpush1.bf16.msra.mxu0 0
        %1791 = vmatprep.subr.bf16.mxu0 0
        %1792 = vmatpush1.bf16.msra.mxu0 0
        %1793 = vmatprep.subr.bf16.mxu0 0
        %1794 = vmatpush1.bf16.msra.mxu0 0
        %1795 = vmatprep.subr.bf16.mxu0 0
        %1796 = vmatpush1.bf16.msra.mxu0 0
        %1797 = vmatprep.mubr.bf16.mxu0 0
        %1798 = vmatmul.mubr.bf16.gmra.mrb[0].mxu0 %v860
        %v1799 = vpop.f32.mrb[0].mxu0
        %v1800 = vadd.f32 %v1715, %v1799
        %v1801 = vpop.f32.mrb[0].mxu0
        %v1802 = vpop.f32.mrb[0].mxu0
        %v1803 = vpop.f32.mrb[0].mxu0
        %1804 = vdwg.mxu0
        %v1805 = vxor.u32 %v1689, 2147483648
        %v1806 = vmul.f32 %v1805, 1.442695
        %v1807 = vpow.pop %v1806
        %v1808 = vadd.f32 %v1807, 1.0
        %v1809 = vrcp.pop %v1808
        %v1810 = vmul.f32 1.0, %v1809
        %v1811 = vmul.f32 %v1810, %v1800
        %v1812 = vadd.f32 %v859, %v1578
        %v1813 = vadd.f32 %v1812, %v1811
        %1814 = vadd.xlane.f32.xlu0 %v1813
        %v1815 = vpop.xlane.xlu0 %1814
        %v1816 = vmul.f32 %v1815, 0.03125
        %v1817 = vsub.f32 %v1813, %v1816
        %v1818 = vlaneseq
        %v1819 = vand.u32 %v1818, 127
        %vm1820 = vcmp.lt.s32.totalorder %v1819, 32
        %v1821 = vsel %vm1820, 1, 0
        %vm1822 = vcmp.eq.s32.totalorder %v1821, 1
        %v1823 = vsel %vm1822, %v1817, 0.0
        %v1824 = vmul.f32 %v1823, %v1823
        %1825 = vadd.xlane.f32.xlu0 %v1824
        %v1826 = vpop.xlane.xlu0 %1825
        %v1827 = vmul.f32 %v1826, 0.03125
        %v1828 = vadd.f32 %v1827, 1e-06
        %v1829 = vrsqrt.pop %v1828
        %v1830 = vmul.f32 %v1823, %v1829
        %v1831 = vld [vmem:[%s15] sm:$0x1]
        %v1833 = vlaneseq
        %v1834 = vshrl.u32 %v1833, 7
        %v1835 = vsub.s32 0, %v1834
        %v1836 = vrot.slane %v1831, %v1835
        %v1838 = vmul.f32 %v1830, %v1836
        %v1839 = vld [vmem:[%s16] sm:$0x1]
        %v1841 = vlaneseq
        %v1842 = vshrl.u32 %v1841, 7
        %v1843 = vsub.s32 0, %v1842
        %v1844 = vrot.slane %v1839, %v1843
        %v1846 = vadd.f32 %v1838, %v1844
        %1847 = vst [vmem:[%s587] sm:$0xff] %v1846
        %s1848 = sand.u32 %s427, 1
        %s1849 = scalar_lea.sflag [#allocation5], %s1848
        %s1850 = sand.u32 %s427, 1
        %s1851 = smul.addr %s1850, 8
        %s1852 = scalar_lea.vmem [#allocation4], %s1851
        // Predicated region
        $region93: #{tpu_custom_call.1} parent=87 // pred_check
          %p1853 = pneg %p437
        $region94: #{tpu_custom_call.1} parent=87 // pred_check_branch
          %1855 = sbr.rel (%p1853) target = $region96
        $region95: #{tpu_custom_call.1} parent=87 // pred_region
          %s1857 = ssub.s32 128, 128
          %1858 = vsyncadd %s1849, %s1857
          %s1859 = sadd.s32 %s36, %s35
          %s1860 = smul.addr %s1859, 128
          %s1861 = scalar_lea.hbm %s17, %s1860
          %s1863 = sshll.u32 %s1852, 4
          %s1864 = int_to_ptr.vmem [resolvable:$true] %s1863
          %1866 = dma.vmem_to_hbm [thread:$0]  %s1864, 128, %s1861, %s1849
        $region96: #{tpu_custom_call.1} parent=87 // pred_fallthru
          _
      $region88: #{tpu_custom_call.1} parent=5 // pred_fallthru
        _
      %p1867 = scmp.le.s32.totalorder 2, %s26
      // Predicated region
      $region97: #{tpu_custom_call.1} parent=5 // pred_check
        %p1868 = pneg %p1867
      $region98: #{tpu_custom_call.1} parent=5 // pred_check_branch
        %1870 = sbr.rel (%p1868) target = $region100
      $region99: #{tpu_custom_call.1} parent=5 // pred_region
        %s1871 = ssub.s32 %s26, 2
        // Predicated region
        $region101: #{tpu_custom_call.1} parent=99 // pred_check
          %p1872 = pneg %p443
        $region102: #{tpu_custom_call.1} parent=99 // pred_check_branch
          %1874 = sbr.rel (%p1872) target = $region104
        $region103: #{tpu_custom_call.1} parent=99 // pred_region
          %s1875 = sand.u32 %s428, 1
          %s1876 = scalar_lea.sflag [#allocation5], %s1875
          %s1877 = sand.u32 %s428, 1
          %s1878 = smul.addr %s1877, 8
          %s1879 = scalar_lea.vmem [#allocation4], %s1878
          %1880 = dma.done %s1876, 128
        $region104: #{tpu_custom_call.1} parent=99 // pred_fallthru
          _
      $region100: #{tpu_custom_call.1} parent=5 // pred_fallthru
        _
    $region6: #{tpu_custom_call.1} parent=1 // loop_footer
      %s30 = sadd.s32 1, %s26
    $region7: #{tpu_custom_call.1} parent=1 // loop_footer_branch
      %25 = sbr.rel target = $region3
    $region8: #{tpu_custom_call.1} parent=1 // loop_exit
      _
    %1881 = vsyncpa [#allocation5], 1
    %s1882 = scalar_lea.sflag [#allocation5], 1
    %1883 = vsyncpa %s1882, 1

</llo_original>
